<compile_context>
chip_gen: v7x
topology: tpu7x:2x2x1
jax: 0.10.0
libtpu: 0.0.40
codegen_flags: <defaults>
</compile_context>

<pallas_src>
import math

import jax
import jax.numpy as jnp
from jax.experimental import pallas as pl
from jax.experimental.pallas import tpu as pltpu

# -----------------------------------------------------------------------------
# Config (small, consistent with the module: fc1/fc2 are Linear(100,100) so the
# embedding dim is 100; Wp is (1,50) so position_dim is 50)
# -----------------------------------------------------------------------------
VOCAB_SIZE = 50
V_PAD = 128                 # lane-padded vocab width (50 -> 128)
EMBED_DIM = 100
E_PAD = 128                 # lane-padded feature width (100 -> 128)
POSITION_SIZE = 16
POSITION_DIM = 50
N_SENT = 8                  # number of sentences
T_WORDS = 16                # max words per sentence

VMEM_SPEC = pl.BlockSpec(memory_space=pltpu.MemorySpace.VMEM)


# -----------------------------------------------------------------------------
# Fused Pallas kernel: the entire forward pass
# -----------------------------------------------------------------------------
def runner_kernel(x_ref, emb_ref, fc1w_ref, fc1b_ref, fc2w_ref, fc2b_ref,
                  wsT_ref, wr_ref, wc_ref, pos_ref, b_ref, out_ref):
    N, T = x_ref.shape
    Vp, E = emb_ref.shape       # (128, 128) after padding

    ids = x_ref[...]                                                   # (N,T) int32

    # sequence_length = sum(sign(x), dim=1)   (f32 lane-reduce)
    len_f = jnp.sum((ids > 0).astype(jnp.float32), axis=1, keepdims=True)   # (N,1)

    # Embedding lookup + length-masked mean fused as a token-count matmul:
    #   sent[i] = (1/len_i) * sum_{t < len_i} emb[ids[i,t]]
    #           = (counts[i] @ emb) / len_i,  counts[i,v] = #{t<len_i: ids[i,t]==v}
    t_idx = jax.lax.broadcasted_iota(jnp.int32, (N, T), 1)
    masked_ids = jnp.where(t_idx < len_f.astype(jnp.int32), ids, -1)  # pads never match
    v_lanes = jax.lax.broadcasted_iota(jnp.int32, (N, Vp), 1)          # (N, 128)
    counts = jnp.zeros((N, Vp), jnp.float32)
    for t in range(T):                                     # static unroll (T=16), VALU only
        counts = counts + (masked_ids[:, t:t + 1] == v_lanes).astype(jnp.float32)
    # TODO(synk): guard len==0 with max(.,1); PyTorch would produce NaN here.
    inv_len = 1.0 / jnp.maximum(len_f, 1.0)                                 # (N,1)
    sent = jnp.dot(counts, emb_ref[...],
                   preferred_element_type=jnp.float32) * inv_len            # (N,E)

    # doc = tanh(fc1(mean over all sentences))   (row vector)
    doc_feat = jnp.mean(sent, axis=0, keepdims=True)                        # (1,E)
    doc = jnp.tanh(jnp.dot(doc_feat, fc1w_ref[...],
                           preferred_element_type=jnp.float32) + fc1b_ref[...])

    # Hoisted out of the serial loop:
    #   H[k]      = tanh(fc2(sent_k))                      (row vectors)
    #   combined  = Wc + (doc @ Ws^T)      -> content + salience = sum(H * combined)
    #   HWr[k]    = H[k] @ Wr              -> novelty_k = -HWr[k] . tanh(s)
    H = jnp.tanh(jnp.dot(sent, fc2w_ref[...],
                         preferred_element_type=jnp.float32) + fc2b_ref[...])   # (N,E)
    combined = wc_ref[...] + jnp.dot(doc, wsT_ref[...],
                                     preferred_element_type=jnp.float32)        # (1,E)
    base = (jnp.sum(H * combined, axis=1, keepdims=True)    # content + salience
            + pos_ref[0:N, :]                               # Wp @ position_emb[k]
            + b_ref[...])                                   # bias          (N,1)
    HWr = jnp.dot(H, wr_ref[...], preferred_element_type=jnp.float32)           # (N,E)

    # Serial sentence loop: only the novelty/state-update dependency remains.
    s = jnp.zeros((1, E), jnp.float32)
    for k in range(N):                                      # static unroll (N=8)
        novelty = -jnp.sum(HWr[k:k + 1, :] * jnp.tanh(s), axis=1, keepdims=True)
        prob = jax.nn.sigmoid(base[k:k + 1, :] + novelty)                   # (1,1)
        s = s + H[k:k + 1, :] * prob
        out_ref[k:k + 1, :] = prob


# -----------------------------------------------------------------------------
# Wrapper
# -----------------------------------------------------------------------------
def simple_runner_forward(params, x_ids):
    n = x_ids.shape[0]
    return pl.pallas_call(
        runner_kernel,
        out_shape=jax.ShapeDtypeStruct((n, 1), jnp.float32),
        in_specs=[VMEM_SPEC] * 11,
        out_specs=VMEM_SPEC,
    )(x_ids, params["emb"], params["fc1_wT"], params["fc1_b"],
      params["fc2_wT"], params["fc2_b"], params["wsT"], params["wr"],
      params["wc"], params["pos_score"], params["b"])


# -----------------------------------------------------------------------------
# Parameter init (PyTorch-style) + one-time weight prep (transpose / pad / fold)
# -----------------------------------------------------------------------------
def _pad2(a, rows, cols):
    out = jnp.zeros((rows, cols), a.dtype)
    return out.at[:a.shape[0], :a.shape[1]].set(a)


def init_params(seed=0):
    key = jax.random.PRNGKey(seed)
    k = jax.random.split(key, 11)
    emb = jax.random.normal(k[0], (VOCAB_SIZE, EMBED_DIM), jnp.float32)       # pretrained_embedding stand-in
    pos_emb = jax.random.normal(k[1], (POSITION_SIZE, POSITION_DIM), jnp.float32)
    bound = 1.0 / math.sqrt(EMBED_DIM)
    fc1_w = jax.random.uniform(k[2], (EMBED_DIM, EMBED_DIM), jnp.float32, -bound, bound)
    fc1_b = jax.random.uniform(k[3], (EMBED_DIM,), jnp.float32, -bound, bound)
    fc2_w = jax.random.uniform(k[4], (EMBED_DIM, EMBED_DIM), jnp.float32, -bound, bound)
    fc2_b = jax.random.uniform(k[5], (EMBED_DIM,), jnp.float32, -bound, bound)
    Wc = jax.random.normal(k[6], (1, EMBED_DIM), jnp.float32)
    Ws = jax.random.normal(k[7], (EMBED_DIM, EMBED_DIM), jnp.float32)
    Wr = jax.random.normal(k[8], (EMBED_DIM, EMBED_DIM), jnp.float32)
    Wp = jax.random.normal(k[9], (1, POSITION_DIM), jnp.float32)
    b = jax.random.normal(k[10], (1,), jnp.float32)

    # One-time prep: pre-transpose for lane-dense x @ W^T, zero-pad vocab and
    # feature dims to 128 lanes (mathematically exact: padded rows/cols are
    # zero), and fold Wp @ position_embedding into a per-position scalar score.
    return {
        "emb": _pad2(emb, V_PAD, E_PAD),                      # (128, 128)
        "fc1_wT": _pad2(fc1_w.T, E_PAD, E_PAD),               # (128, 128)
        "fc1_b": _pad2(fc1_b[None, :], 1, E_PAD),             # (1, 128)
        "fc2_wT": _pad2(fc2_w.T, E_PAD, E_PAD),               # (128, 128)
        "fc2_b": _pad2(fc2_b[None, :], 1, E_PAD),             # (1, 128)
        "wsT": _pad2(Ws.T, E_PAD, E_PAD),                     # (128, 128)
        "wr": _pad2(Wr, E_PAD, E_PAD),                        # (128, 128)
        "wc": _pad2(Wc, 1, E_PAD),                            # (1, 128)
        "pos_score": pos_emb @ Wp.T,                          # (POSITION_SIZE, 1)
        "b": b.reshape(1, 1),                                 # (1, 1)
    }


# -----------------------------------------------------------------------------
# Main
# -----------------------------------------------------------------------------
if __name__ == "__main__":
    params = init_params(seed=0)

    # deterministic token ids in [1, vocab) with variable valid lengths, 0 = pad
    key = jax.random.PRNGKey(0)
    key, kx = jax.random.split(key)
    x = jax.random.randint(kx, (N_SENT, T_WORDS), 1, VOCAB_SIZE, dtype=jnp.int32)
    lengths = jnp.array([16, 12, 9, 16, 5, 8, 14, 10], dtype=jnp.int32)
    pad_mask = (jnp.arange(T_WORDS)[None, :] < lengths[:, None]).astype(jnp.int32)
    x = x * pad_mask

    fwd = jax.jit(simple_runner_forward)
    prob = fwd(params, x)
    jax.block_until_ready(prob)

    assert prob.shape == (N_SENT, 1), prob.shape
    assert prob.dtype == jnp.float32
    assert bool(jnp.all(jnp.isfinite(prob)))
    assert bool(jnp.all((prob >= 0.0) & (prob <= 1.0)))
    print("KERNEL_OK")
</pallas_src>

<mosaic_0001>
module attributes {stable_mosaic.version = 11 : i64} {
  func.func @runner_kernel(%arg0: memref<8x16xi32, #tpu.memory_space<vmem>>, %arg1: memref<128x128xf32, #tpu.memory_space<vmem>>, %arg2: memref<128x128xf32, #tpu.memory_space<vmem>>, %arg3: memref<1x128xf32, #tpu.memory_space<vmem>>, %arg4: memref<128x128xf32, #tpu.memory_space<vmem>>, %arg5: memref<1x128xf32, #tpu.memory_space<vmem>>, %arg6: memref<128x128xf32, #tpu.memory_space<vmem>>, %arg7: memref<128x128xf32, #tpu.memory_space<vmem>>, %arg8: memref<1x128xf32, #tpu.memory_space<vmem>>, %arg9: memref<16x1xf32, #tpu.memory_space<vmem>>, %arg10: memref<1x1xf32, #tpu.memory_space<vmem>>, %arg11: memref<8x1xf32, #tpu.memory_space<vmem>>) attributes {dimension_semantics = [], scalar_prefetch = 0 : i64, scratch_operands = 0 : i64, tpu.core_type = #tpu.core_type<tc>} {
    %c0 = arith.constant 0 : index
    %c0_0 = arith.constant 0 : index
    %0 = vector.load %arg0[%c0, %c0_0] : memref<8x16xi32, #tpu.memory_space<vmem>>, vector<8x16xi32>
    %c0_i32 = arith.constant 0 : i32
    %1 = vector.broadcast %c0_i32 : i32 to vector<8x16xi32>
    %2 = arith.cmpi sgt, %0, %1 : vector<8x16xi32>
    %3 = arith.extui %2 : vector<8x16xi1> to vector<8x16xi32>
    %4 = arith.sitofp %3 : vector<8x16xi32> to vector<8x16xf32>
    %cst = arith.constant dense<0.000000e+00> : vector<8xf32>
    %5 = vector.multi_reduction <add>, %4, %cst [1] : vector<8x16xf32> to vector<8xf32>
    %6 = vector.shape_cast %5 : vector<8xf32> to vector<8x1xf32>
    %7 = tpu.iota {dimensions = array<i32: 1>} : vector<8x16xi32>
    %8 = arith.fptosi %6 : vector<8x1xf32> to vector<8x1xi32>
    %9 = vector.broadcast %8 : vector<8x1xi32> to vector<8x16xi32>
    %10 = arith.cmpi slt, %7, %9 : vector<8x16xi32>
    %c-1_i32 = arith.constant -1 : i32
    %11 = vector.broadcast %c-1_i32 : i32 to vector<8x16xi32>
    %12 = arith.select %10, %0, %11 : vector<8x16xi1>, vector<8x16xi32>
    %13 = tpu.iota {dimensions = array<i32: 1>} : vector<8x128xi32>
    %cst_1 = arith.constant 0.000000e+00 : f32
    %14 = vector.broadcast %cst_1 : f32 to vector<8x128xf32>
    %15 = vector.extract_strided_slice %12 {offsets = [0, 0], sizes = [8, 1], strides = [1, 1]} : vector<8x16xi32> to vector<8x1xi32>
    %16 = vector.broadcast %15 : vector<8x1xi32> to vector<8x128xi32>
    %17 = arith.cmpi eq, %16, %13 : vector<8x128xi32>
    %18 = arith.extui %17 : vector<8x128xi1> to vector<8x128xi32>
    %19 = arith.sitofp %18 : vector<8x128xi32> to vector<8x128xf32>
    %20 = arith.addf %14, %19 : vector<8x128xf32>
    %21 = vector.extract_strided_slice %12 {offsets = [0, 1], sizes = [8, 1], strides = [1, 1]} : vector<8x16xi32> to vector<8x1xi32>
    %22 = vector.broadcast %21 : vector<8x1xi32> to vector<8x128xi32>
    %23 = arith.cmpi eq, %22, %13 : vector<8x128xi32>
    %24 = arith.extui %23 : vector<8x128xi1> to vector<8x128xi32>
    %25 = arith.sitofp %24 : vector<8x128xi32> to vector<8x128xf32>
    %26 = arith.addf %20, %25 : vector<8x128xf32>
    %27 = vector.extract_strided_slice %12 {offsets = [0, 2], sizes = [8, 1], strides = [1, 1]} : vector<8x16xi32> to vector<8x1xi32>
    %28 = vector.broadcast %27 : vector<8x1xi32> to vector<8x128xi32>
    %29 = arith.cmpi eq, %28, %13 : vector<8x128xi32>
    %30 = arith.extui %29 : vector<8x128xi1> to vector<8x128xi32>
    %31 = arith.sitofp %30 : vector<8x128xi32> to vector<8x128xf32>
    %32 = arith.addf %26, %31 : vector<8x128xf32>
    %33 = vector.extract_strided_slice %12 {offsets = [0, 3], sizes = [8, 1], strides = [1, 1]} : vector<8x16xi32> to vector<8x1xi32>
    %34 = vector.broadcast %33 : vector<8x1xi32> to vector<8x128xi32>
    %35 = arith.cmpi eq, %34, %13 : vector<8x128xi32>
    %36 = arith.extui %35 : vector<8x128xi1> to vector<8x128xi32>
    %37 = arith.sitofp %36 : vector<8x128xi32> to vector<8x128xf32>
    %38 = arith.addf %32, %37 : vector<8x128xf32>
    %39 = vector.extract_strided_slice %12 {offsets = [0, 4], sizes = [8, 1], strides = [1, 1]} : vector<8x16xi32> to vector<8x1xi32>
    %40 = vector.broadcast %39 : vector<8x1xi32> to vector<8x128xi32>
    %41 = arith.cmpi eq, %40, %13 : vector<8x128xi32>
    %42 = arith.extui %41 : vector<8x128xi1> to vector<8x128xi32>
    %43 = arith.sitofp %42 : vector<8x128xi32> to vector<8x128xf32>
    %44 = arith.addf %38, %43 : vector<8x128xf32>
    %45 = vector.extract_strided_slice %12 {offsets = [0, 5], sizes = [8, 1], strides = [1, 1]} : vector<8x16xi32> to vector<8x1xi32>
    %46 = vector.broadcast %45 : vector<8x1xi32> to vector<8x128xi32>
    %47 = arith.cmpi eq, %46, %13 : vector<8x128xi32>
    %48 = arith.extui %47 : vector<8x128xi1> to vector<8x128xi32>
    %49 = arith.sitofp %48 : vector<8x128xi32> to vector<8x128xf32>
    %50 = arith.addf %44, %49 : vector<8x128xf32>
    %51 = vector.extract_strided_slice %12 {offsets = [0, 6], sizes = [8, 1], strides = [1, 1]} : vector<8x16xi32> to vector<8x1xi32>
    %52 = vector.broadcast %51 : vector<8x1xi32> to vector<8x128xi32>
    %53 = arith.cmpi eq, %52, %13 : vector<8x128xi32>
    %54 = arith.extui %53 : vector<8x128xi1> to vector<8x128xi32>
    %55 = arith.sitofp %54 : vector<8x128xi32> to vector<8x128xf32>
    %56 = arith.addf %50, %55 : vector<8x128xf32>
    %57 = vector.extract_strided_slice %12 {offsets = [0, 7], sizes = [8, 1], strides = [1, 1]} : vector<8x16xi32> to vector<8x1xi32>
    %58 = vector.broadcast %57 : vector<8x1xi32> to vector<8x128xi32>
    %59 = arith.cmpi eq, %58, %13 : vector<8x128xi32>
    %60 = arith.extui %59 : vector<8x128xi1> to vector<8x128xi32>
    %61 = arith.sitofp %60 : vector<8x128xi32> to vector<8x128xf32>
    %62 = arith.addf %56, %61 : vector<8x128xf32>
    %63 = vector.extract_strided_slice %12 {offsets = [0, 8], sizes = [8, 1], strides = [1, 1]} : vector<8x16xi32> to vector<8x1xi32>
    %64 = vector.broadcast %63 : vector<8x1xi32> to vector<8x128xi32>
    %65 = arith.cmpi eq, %64, %13 : vector<8x128xi32>
    %66 = arith.extui %65 : vector<8x128xi1> to vector<8x128xi32>
    %67 = arith.sitofp %66 : vector<8x128xi32> to vector<8x128xf32>
    %68 = arith.addf %62, %67 : vector<8x128xf32>
    %69 = vector.extract_strided_slice %12 {offsets = [0, 9], sizes = [8, 1], strides = [1, 1]} : vector<8x16xi32> to vector<8x1xi32>
    %70 = vector.broadcast %69 : vector<8x1xi32> to vector<8x128xi32>
    %71 = arith.cmpi eq, %70, %13 : vector<8x128xi32>
    %72 = arith.extui %71 : vector<8x128xi1> to vector<8x128xi32>
    %73 = arith.sitofp %72 : vector<8x128xi32> to vector<8x128xf32>
    %74 = arith.addf %68, %73 : vector<8x128xf32>
    %75 = vector.extract_strided_slice %12 {offsets = [0, 10], sizes = [8, 1], strides = [1, 1]} : vector<8x16xi32> to vector<8x1xi32>
    %76 = vector.broadcast %75 : vector<8x1xi32> to vector<8x128xi32>
    %77 = arith.cmpi eq, %76, %13 : vector<8x128xi32>
    %78 = arith.extui %77 : vector<8x128xi1> to vector<8x128xi32>
    %79 = arith.sitofp %78 : vector<8x128xi32> to vector<8x128xf32>
    %80 = arith.addf %74, %79 : vector<8x128xf32>
    %81 = vector.extract_strided_slice %12 {offsets = [0, 11], sizes = [8, 1], strides = [1, 1]} : vector<8x16xi32> to vector<8x1xi32>
    %82 = vector.broadcast %81 : vector<8x1xi32> to vector<8x128xi32>
    %83 = arith.cmpi eq, %82, %13 : vector<8x128xi32>
    %84 = arith.extui %83 : vector<8x128xi1> to vector<8x128xi32>
    %85 = arith.sitofp %84 : vector<8x128xi32> to vector<8x128xf32>
    %86 = arith.addf %80, %85 : vector<8x128xf32>
    %87 = vector.extract_strided_slice %12 {offsets = [0, 12], sizes = [8, 1], strides = [1, 1]} : vector<8x16xi32> to vector<8x1xi32>
    %88 = vector.broadcast %87 : vector<8x1xi32> to vector<8x128xi32>
    %89 = arith.cmpi eq, %88, %13 : vector<8x128xi32>
    %90 = arith.extui %89 : vector<8x128xi1> to vector<8x128xi32>
    %91 = arith.sitofp %90 : vector<8x128xi32> to vector<8x128xf32>
    %92 = arith.addf %86, %91 : vector<8x128xf32>
    %93 = vector.extract_strided_slice %12 {offsets = [0, 13], sizes = [8, 1], strides = [1, 1]} : vector<8x16xi32> to vector<8x1xi32>
    %94 = vector.broadcast %93 : vector<8x1xi32> to vector<8x128xi32>
    %95 = arith.cmpi eq, %94, %13 : vector<8x128xi32>
    %96 = arith.extui %95 : vector<8x128xi1> to vector<8x128xi32>
    %97 = arith.sitofp %96 : vector<8x128xi32> to vector<8x128xf32>
    %98 = arith.addf %92, %97 : vector<8x128xf32>
    %99 = vector.extract_strided_slice %12 {offsets = [0, 14], sizes = [8, 1], strides = [1, 1]} : vector<8x16xi32> to vector<8x1xi32>
    %100 = vector.broadcast %99 : vector<8x1xi32> to vector<8x128xi32>
    %101 = arith.cmpi eq, %100, %13 : vector<8x128xi32>
    %102 = arith.extui %101 : vector<8x128xi1> to vector<8x128xi32>
    %103 = arith.sitofp %102 : vector<8x128xi32> to vector<8x128xf32>
    %104 = arith.addf %98, %103 : vector<8x128xf32>
    %105 = vector.extract_strided_slice %12 {offsets = [0, 15], sizes = [8, 1], strides = [1, 1]} : vector<8x16xi32> to vector<8x1xi32>
    %106 = vector.broadcast %105 : vector<8x1xi32> to vector<8x128xi32>
    %107 = arith.cmpi eq, %106, %13 : vector<8x128xi32>
    %108 = arith.extui %107 : vector<8x128xi1> to vector<8x128xi32>
    %109 = arith.sitofp %108 : vector<8x128xi32> to vector<8x128xf32>
    %110 = arith.addf %104, %109 : vector<8x128xf32>
    %cst_2 = arith.constant 1.000000e+00 : f32
    %111 = vector.broadcast %cst_2 : f32 to vector<8x1xf32>
    %112 = arith.maximumf %6, %111 : vector<8x1xf32>
    %cst_3 = arith.constant 1.000000e+00 : f32
    %113 = vector.broadcast %cst_3 : f32 to vector<8x1xf32>
    %114 = arith.divf %113, %112 : vector<8x1xf32>
    %c0_4 = arith.constant 0 : index
    %c0_5 = arith.constant 0 : index
    %115 = vector.load %arg1[%c0_4, %c0_5] : memref<128x128xf32, #tpu.memory_space<vmem>>, vector<128x128xf32>
    %cst_6 = arith.constant dense<0.000000e+00> : vector<8x128xf32>
    %116 = tpu.matmul %110, %115, %cst_6 {dimension_numbers = #tpu.dot_dimension_numbers<[1], [0], [0], [1], [0, 0, 1, 1], [], []>} : vector<8x128xf32>, vector<128x128xf32>, vector<8x128xf32> -> vector<8x128xf32>
    %117 = vector.broadcast %114 : vector<8x1xf32> to vector<8x128xf32>
    %118 = arith.mulf %116, %117 : vector<8x128xf32>
    %cst_7 = arith.constant dense<0.000000e+00> : vector<128xf32>
    %119 = vector.multi_reduction <add>, %118, %cst_7 [0] : vector<8x128xf32> to vector<128xf32>
    %120 = vector.shape_cast %119 : vector<128xf32> to vector<1x128xf32>
    %cst_8 = arith.constant 8.000000e+00 : f32
    %121 = vector.broadcast %cst_8 : f32 to vector<1x128xf32>
    %122 = arith.divf %120, %121 : vector<1x128xf32>
    %c0_9 = arith.constant 0 : index
    %c0_10 = arith.constant 0 : index
    %123 = vector.load %arg2[%c0_9, %c0_10] : memref<128x128xf32, #tpu.memory_space<vmem>>, vector<128x128xf32>
    %cst_11 = arith.constant dense<0.000000e+00> : vector<1x128xf32>
    %124 = tpu.matmul %122, %123, %cst_11 {dimension_numbers = #tpu.dot_dimension_numbers<[1], [0], [0], [1], [0, 0, 1, 1], [], []>} : vector<1x128xf32>, vector<128x128xf32>, vector<1x128xf32> -> vector<1x128xf32>
    %c0_12 = arith.constant 0 : index
    %c0_13 = arith.constant 0 : index
    %125 = vector.load %arg3[%c0_12, %c0_13] : memref<1x128xf32, #tpu.memory_space<vmem>>, vector<1x128xf32>
    %126 = arith.addf %124, %125 : vector<1x128xf32>
    %127 = math.tanh %126 : vector<1x128xf32>
    %c0_14 = arith.constant 0 : index
    %c0_15 = arith.constant 0 : index
    %128 = vector.load %arg4[%c0_14, %c0_15] : memref<128x128xf32, #tpu.memory_space<vmem>>, vector<128x128xf32>
    %cst_16 = arith.constant dense<0.000000e+00> : vector<8x128xf32>
    %129 = tpu.matmul %118, %128, %cst_16 {dimension_numbers = #tpu.dot_dimension_numbers<[1], [0], [0], [1], [0, 0, 1, 1], [], []>} : vector<8x128xf32>, vector<128x128xf32>, vector<8x128xf32> -> vector<8x128xf32>
    %c0_17 = arith.constant 0 : index
    %c0_18 = arith.constant 0 : index
    %130 = vector.load %arg5[%c0_17, %c0_18] : memref<1x128xf32, #tpu.memory_space<vmem>>, vector<1x128xf32>
    %131 = vector.broadcast %130 : vector<1x128xf32> to vector<8x128xf32>
    %132 = arith.addf %129, %131 : vector<8x128xf32>
    %133 = math.tanh %132 : vector<8x128xf32>
    %c0_19 = arith.constant 0 : index
    %c0_20 = arith.constant 0 : index
    %134 = vector.load %arg8[%c0_19, %c0_20] : memref<1x128xf32, #tpu.memory_space<vmem>>, vector<1x128xf32>
    %c0_21 = arith.constant 0 : index
    %c0_22 = arith.constant 0 : index
    %135 = vector.load %arg6[%c0_21, %c0_22] : memref<128x128xf32, #tpu.memory_space<vmem>>, vector<128x128xf32>
    %cst_23 = arith.constant dense<0.000000e+00> : vector<1x128xf32>
    %136 = tpu.matmul %127, %135, %cst_23 {dimension_numbers = #tpu.dot_dimension_numbers<[1], [0], [0], [1], [0, 0, 1, 1], [], []>} : vector<1x128xf32>, vector<128x128xf32>, vector<1x128xf32> -> vector<1x128xf32>
    %137 = arith.addf %134, %136 : vector<1x128xf32>
    %138 = vector.broadcast %137 : vector<1x128xf32> to vector<8x128xf32>
    %139 = arith.mulf %133, %138 : vector<8x128xf32>
    %cst_24 = arith.constant dense<0.000000e+00> : vector<8xf32>
    %140 = vector.multi_reduction <add>, %139, %cst_24 [1] : vector<8x128xf32> to vector<8xf32>
    %141 = vector.shape_cast %140 : vector<8xf32> to vector<8x1xf32>
    %c0_25 = arith.constant 0 : index
    %c0_26 = arith.constant 0 : index
    %142 = vector.load %arg9[%c0_25, %c0_26] : memref<16x1xf32, #tpu.memory_space<vmem>>, vector<8x1xf32>
    %143 = arith.addf %141, %142 : vector<8x1xf32>
    %c0_27 = arith.constant 0 : index
    %c0_28 = arith.constant 0 : index
    %144 = vector.load %arg10[%c0_27, %c0_28] : memref<1x1xf32, #tpu.memory_space<vmem>>, vector<1x1xf32>
    %145 = vector.broadcast %144 : vector<1x1xf32> to vector<8x1xf32>
    %146 = arith.addf %143, %145 : vector<8x1xf32>
    %c0_29 = arith.constant 0 : index
    %c0_30 = arith.constant 0 : index
    %147 = vector.load %arg7[%c0_29, %c0_30] : memref<128x128xf32, #tpu.memory_space<vmem>>, vector<128x128xf32>
    %cst_31 = arith.constant dense<0.000000e+00> : vector<8x128xf32>
    %148 = tpu.matmul %133, %147, %cst_31 {dimension_numbers = #tpu.dot_dimension_numbers<[1], [0], [0], [1], [0, 0, 1, 1], [], []>} : vector<8x128xf32>, vector<128x128xf32>, vector<8x128xf32> -> vector<8x128xf32>
    %cst_32 = arith.constant 0.000000e+00 : f32
    %149 = vector.broadcast %cst_32 : f32 to vector<1x128xf32>
    %150 = vector.extract_strided_slice %148 {offsets = [0, 0], sizes = [1, 128], strides = [1, 1]} : vector<8x128xf32> to vector<1x128xf32>
    %151 = math.tanh %149 : vector<1x128xf32>
    %152 = arith.mulf %150, %151 : vector<1x128xf32>
    %cst_33 = arith.constant dense<0.000000e+00> : vector<1xf32>
    %153 = vector.multi_reduction <add>, %152, %cst_33 [1] : vector<1x128xf32> to vector<1xf32>
    %154 = vector.shape_cast %153 : vector<1xf32> to vector<1x1xf32>
    %cst_34 = arith.constant 0.000000e+00 : f32
    %155 = vector.broadcast %cst_34 : f32 to vector<1x1xf32>
    %156 = arith.subf %155, %154 : vector<1x1xf32>
    %157 = vector.extract_strided_slice %146 {offsets = [0, 0], sizes = [1, 1], strides = [1, 1]} : vector<8x1xf32> to vector<1x1xf32>
    %158 = arith.addf %157, %156 : vector<1x1xf32>
    %159 = arith.negf %158 : vector<1x1xf32>
    %160 = math.exp %159 : vector<1x1xf32>
    %cst_35 = arith.constant 1.000000e+00 : f32
    %161 = vector.broadcast %cst_35 : f32 to vector<1x1xf32>
    %162 = arith.addf %161, %160 : vector<1x1xf32>
    %163 = arith.divf %161, %162 : vector<1x1xf32>
    %164 = vector.extract_strided_slice %133 {offsets = [0, 0], sizes = [1, 128], strides = [1, 1]} : vector<8x128xf32> to vector<1x128xf32>
    %165 = vector.broadcast %163 : vector<1x1xf32> to vector<1x128xf32>
    %166 = arith.mulf %164, %165 : vector<1x128xf32>
    %167 = arith.addf %149, %166 : vector<1x128xf32>
    %c0_36 = arith.constant 0 : index
    %c0_37 = arith.constant 0 : index
    %168 = vector.load %arg11[%c0_36, %c0_37] : memref<8x1xf32, #tpu.memory_space<vmem>>, vector<1x1xf32>
    tpu.vector_store %arg11[%c0_36, %c0_37], %163 {strides = array<i32>} : memref<8x1xf32, #tpu.memory_space<vmem>>, vector<1x1xf32>,
    %169 = vector.extract_strided_slice %148 {offsets = [1, 0], sizes = [1, 128], strides = [1, 1]} : vector<8x128xf32> to vector<1x128xf32>
    %170 = math.tanh %167 : vector<1x128xf32>
    %171 = arith.mulf %169, %170 : vector<1x128xf32>
    %cst_38 = arith.constant dense<0.000000e+00> : vector<1xf32>
    %172 = vector.multi_reduction <add>, %171, %cst_38 [1] : vector<1x128xf32> to vector<1xf32>
    %173 = vector.shape_cast %172 : vector<1xf32> to vector<1x1xf32>
    %cst_39 = arith.constant 0.000000e+00 : f32
    %174 = vector.broadcast %cst_39 : f32 to vector<1x1xf32>
    %175 = arith.subf %174, %173 : vector<1x1xf32>
    %176 = vector.extract_strided_slice %146 {offsets = [1, 0], sizes = [1, 1], strides = [1, 1]} : vector<8x1xf32> to vector<1x1xf32>
    %177 = arith.addf %176, %175 : vector<1x1xf32>
    %178 = arith.negf %177 : vector<1x1xf32>
    %179 = math.exp %178 : vector<1x1xf32>
    %cst_40 = arith.constant 1.000000e+00 : f32
    %180 = vector.broadcast %cst_40 : f32 to vector<1x1xf32>
    %181 = arith.addf %180, %179 : vector<1x1xf32>
    %182 = arith.divf %180, %181 : vector<1x1xf32>
    %183 = vector.extract_strided_slice %133 {offsets = [1, 0], sizes = [1, 128], strides = [1, 1]} : vector<8x128xf32> to vector<1x128xf32>
    %184 = vector.broadcast %182 : vector<1x1xf32> to vector<1x128xf32>
    %185 = arith.mulf %183, %184 : vector<1x128xf32>
    %186 = arith.addf %167, %185 : vector<1x128xf32>
    %c1 = arith.constant 1 : index
    %c0_41 = arith.constant 0 : index
    %187 = vector.load %arg11[%c1, %c0_41] : memref<8x1xf32, #tpu.memory_space<vmem>>, vector<1x1xf32>
    tpu.vector_store %arg11[%c1, %c0_41], %182 {strides = array<i32>} : memref<8x1xf32, #tpu.memory_space<vmem>>, vector<1x1xf32>,
    %188 = vector.extract_strided_slice %148 {offsets = [2, 0], sizes = [1, 128], strides = [1, 1]} : vector<8x128xf32> to vector<1x128xf32>
    %189 = math.tanh %186 : vector<1x128xf32>
    %190 = arith.mulf %188, %189 : vector<1x128xf32>
    %cst_42 = arith.constant dense<0.000000e+00> : vector<1xf32>
    %191 = vector.multi_reduction <add>, %190, %cst_42 [1] : vector<1x128xf32> to vector<1xf32>
    %192 = vector.shape_cast %191 : vector<1xf32> to vector<1x1xf32>
    %cst_43 = arith.constant 0.000000e+00 : f32
    %193 = vector.broadcast %cst_43 : f32 to vector<1x1xf32>
    %194 = arith.subf %193, %192 : vector<1x1xf32>
    %195 = vector.extract_strided_slice %146 {offsets = [2, 0], sizes = [1, 1], strides = [1, 1]} : vector<8x1xf32> to vector<1x1xf32>
    %196 = arith.addf %195, %194 : vector<1x1xf32>
    %197 = arith.negf %196 : vector<1x1xf32>
    %198 = math.exp %197 : vector<1x1xf32>
    %cst_44 = arith.constant 1.000000e+00 : f32
    %199 = vector.broadcast %cst_44 : f32 to vector<1x1xf32>
    %200 = arith.addf %199, %198 : vector<1x1xf32>
    %201 = arith.divf %199, %200 : vector<1x1xf32>
    %202 = vector.extract_strided_slice %133 {offsets = [2, 0], sizes = [1, 128], strides = [1, 1]} : vector<8x128xf32> to vector<1x128xf32>
    %203 = vector.broadcast %201 : vector<1x1xf32> to vector<1x128xf32>
    %204 = arith.mulf %202, %203 : vector<1x128xf32>
    %205 = arith.addf %186, %204 : vector<1x128xf32>
    %c2 = arith.constant 2 : index
    %c0_45 = arith.constant 0 : index
    %206 = vector.load %arg11[%c2, %c0_45] : memref<8x1xf32, #tpu.memory_space<vmem>>, vector<1x1xf32>
    tpu.vector_store %arg11[%c2, %c0_45], %201 {strides = array<i32>} : memref<8x1xf32, #tpu.memory_space<vmem>>, vector<1x1xf32>,
    %207 = vector.extract_strided_slice %148 {offsets = [3, 0], sizes = [1, 128], strides = [1, 1]} : vector<8x128xf32> to vector<1x128xf32>
    %208 = math.tanh %205 : vector<1x128xf32>
    %209 = arith.mulf %207, %208 : vector<1x128xf32>
    %cst_46 = arith.constant dense<0.000000e+00> : vector<1xf32>
    %210 = vector.multi_reduction <add>, %209, %cst_46 [1] : vector<1x128xf32> to vector<1xf32>
    %211 = vector.shape_cast %210 : vector<1xf32> to vector<1x1xf32>
    %cst_47 = arith.constant 0.000000e+00 : f32
    %212 = vector.broadcast %cst_47 : f32 to vector<1x1xf32>
    %213 = arith.subf %212, %211 : vector<1x1xf32>
    %214 = vector.extract_strided_slice %146 {offsets = [3, 0], sizes = [1, 1], strides = [1, 1]} : vector<8x1xf32> to vector<1x1xf32>
    %215 = arith.addf %214, %213 : vector<1x1xf32>
    %216 = arith.negf %215 : vector<1x1xf32>
    %217 = math.exp %216 : vector<1x1xf32>
    %cst_48 = arith.constant 1.000000e+00 : f32
    %218 = vector.broadcast %cst_48 : f32 to vector<1x1xf32>
    %219 = arith.addf %218, %217 : vector<1x1xf32>
    %220 = arith.divf %218, %219 : vector<1x1xf32>
    %221 = vector.extract_strided_slice %133 {offsets = [3, 0], sizes = [1, 128], strides = [1, 1]} : vector<8x128xf32> to vector<1x128xf32>
    %222 = vector.broadcast %220 : vector<1x1xf32> to vector<1x128xf32>
    %223 = arith.mulf %221, %222 : vector<1x128xf32>
    %224 = arith.addf %205, %223 : vector<1x128xf32>
    %c3 = arith.constant 3 : index
    %c0_49 = arith.constant 0 : index
    %225 = vector.load %arg11[%c3, %c0_49] : memref<8x1xf32, #tpu.memory_space<vmem>>, vector<1x1xf32>
    tpu.vector_store %arg11[%c3, %c0_49], %220 {strides = array<i32>} : memref<8x1xf32, #tpu.memory_space<vmem>>, vector<1x1xf32>,
    %226 = vector.extract_strided_slice %148 {offsets = [4, 0], sizes = [1, 128], strides = [1, 1]} : vector<8x128xf32> to vector<1x128xf32>
    %227 = math.tanh %224 : vector<1x128xf32>
    %228 = arith.mulf %226, %227 : vector<1x128xf32>
    %cst_50 = arith.constant dense<0.000000e+00> : vector<1xf32>
    %229 = vector.multi_reduction <add>, %228, %cst_50 [1] : vector<1x128xf32> to vector<1xf32>
    %230 = vector.shape_cast %229 : vector<1xf32> to vector<1x1xf32>
    %cst_51 = arith.constant 0.000000e+00 : f32
    %231 = vector.broadcast %cst_51 : f32 to vector<1x1xf32>
    %232 = arith.subf %231, %230 : vector<1x1xf32>
    %233 = vector.extract_strided_slice %146 {offsets = [4, 0], sizes = [1, 1], strides = [1, 1]} : vector<8x1xf32> to vector<1x1xf32>
    %234 = arith.addf %233, %232 : vector<1x1xf32>
    %235 = arith.negf %234 : vector<1x1xf32>
    %236 = math.exp %235 : vector<1x1xf32>
    %cst_52 = arith.constant 1.000000e+00 : f32
    %237 = vector.broadcast %cst_52 : f32 to vector<1x1xf32>
    %238 = arith.addf %237, %236 : vector<1x1xf32>
    %239 = arith.divf %237, %238 : vector<1x1xf32>
    %240 = vector.extract_strided_slice %133 {offsets = [4, 0], sizes = [1, 128], strides = [1, 1]} : vector<8x128xf32> to vector<1x128xf32>
    %241 = vector.broadcast %239 : vector<1x1xf32> to vector<1x128xf32>
    %242 = arith.mulf %240, %241 : vector<1x128xf32>
    %243 = arith.addf %224, %242 : vector<1x128xf32>
    %c4 = arith.constant 4 : index
    %c0_53 = arith.constant 0 : index
    %244 = vector.load %arg11[%c4, %c0_53] : memref<8x1xf32, #tpu.memory_space<vmem>>, vector<1x1xf32>
    tpu.vector_store %arg11[%c4, %c0_53], %239 {strides = array<i32>} : memref<8x1xf32, #tpu.memory_space<vmem>>, vector<1x1xf32>,
    %245 = vector.extract_strided_slice %148 {offsets = [5, 0], sizes = [1, 128], strides = [1, 1]} : vector<8x128xf32> to vector<1x128xf32>
    %246 = math.tanh %243 : vector<1x128xf32>
    %247 = arith.mulf %245, %246 : vector<1x128xf32>
    %cst_54 = arith.constant dense<0.000000e+00> : vector<1xf32>
    %248 = vector.multi_reduction <add>, %247, %cst_54 [1] : vector<1x128xf32> to vector<1xf32>
    %249 = vector.shape_cast %248 : vector<1xf32> to vector<1x1xf32>
    %cst_55 = arith.constant 0.000000e+00 : f32
    %250 = vector.broadcast %cst_55 : f32 to vector<1x1xf32>
    %251 = arith.subf %250, %249 : vector<1x1xf32>
    %252 = vector.extract_strided_slice %146 {offsets = [5, 0], sizes = [1, 1], strides = [1, 1]} : vector<8x1xf32> to vector<1x1xf32>
    %253 = arith.addf %252, %251 : vector<1x1xf32>
    %254 = arith.negf %253 : vector<1x1xf32>
    %255 = math.exp %254 : vector<1x1xf32>
    %cst_56 = arith.constant 1.000000e+00 : f32
    %256 = vector.broadcast %cst_56 : f32 to vector<1x1xf32>
    %257 = arith.addf %256, %255 : vector<1x1xf32>
    %258 = arith.divf %256, %257 : vector<1x1xf32>
    %259 = vector.extract_strided_slice %133 {offsets = [5, 0], sizes = [1, 128], strides = [1, 1]} : vector<8x128xf32> to vector<1x128xf32>
    %260 = vector.broadcast %258 : vector<1x1xf32> to vector<1x128xf32>
    %261 = arith.mulf %259, %260 : vector<1x128xf32>
    %262 = arith.addf %243, %261 : vector<1x128xf32>
    %c5 = arith.constant 5 : index
    %c0_57 = arith.constant 0 : index
    %263 = vector.load %arg11[%c5, %c0_57] : memref<8x1xf32, #tpu.memory_space<vmem>>, vector<1x1xf32>
    tpu.vector_store %arg11[%c5, %c0_57], %258 {strides = array<i32>} : memref<8x1xf32, #tpu.memory_space<vmem>>, vector<1x1xf32>,
    %264 = vector.extract_strided_slice %148 {offsets = [6, 0], sizes = [1, 128], strides = [1, 1]} : vector<8x128xf32> to vector<1x128xf32>
    %265 = math.tanh %262 : vector<1x128xf32>
    %266 = arith.mulf %264, %265 : vector<1x128xf32>
    %cst_58 = arith.constant dense<0.000000e+00> : vector<1xf32>
    %267 = vector.multi_reduction <add>, %266, %cst_58 [1] : vector<1x128xf32> to vector<1xf32>
    %268 = vector.shape_cast %267 : vector<1xf32> to vector<1x1xf32>
    %cst_59 = arith.constant 0.000000e+00 : f32
    %269 = vector.broadcast %cst_59 : f32 to vector<1x1xf32>
    %270 = arith.subf %269, %268 : vector<1x1xf32>
    %271 = vector.extract_strided_slice %146 {offsets = [6, 0], sizes = [1, 1], strides = [1, 1]} : vector<8x1xf32> to vector<1x1xf32>
    %272 = arith.addf %271, %270 : vector<1x1xf32>
    %273 = arith.negf %272 : vector<1x1xf32>
    %274 = math.exp %273 : vector<1x1xf32>
    %cst_60 = arith.constant 1.000000e+00 : f32
    %275 = vector.broadcast %cst_60 : f32 to vector<1x1xf32>
    %276 = arith.addf %275, %274 : vector<1x1xf32>
    %277 = arith.divf %275, %276 : vector<1x1xf32>
    %278 = vector.extract_strided_slice %133 {offsets = [6, 0], sizes = [1, 128], strides = [1, 1]} : vector<8x128xf32> to vector<1x128xf32>
    %279 = vector.broadcast %277 : vector<1x1xf32> to vector<1x128xf32>
    %280 = arith.mulf %278, %279 : vector<1x128xf32>
    %281 = arith.addf %262, %280 : vector<1x128xf32>
    %c6 = arith.constant 6 : index
    %c0_61 = arith.constant 0 : index
    %282 = vector.load %arg11[%c6, %c0_61] : memref<8x1xf32, #tpu.memory_space<vmem>>, vector<1x1xf32>
    tpu.vector_store %arg11[%c6, %c0_61], %277 {strides = array<i32>} : memref<8x1xf32, #tpu.memory_space<vmem>>, vector<1x1xf32>,
    %283 = vector.extract_strided_slice %148 {offsets = [7, 0], sizes = [1, 128], strides = [1, 1]} : vector<8x128xf32> to vector<1x128xf32>
    %284 = math.tanh %281 : vector<1x128xf32>
    %285 = arith.mulf %283, %284 : vector<1x128xf32>
    %cst_62 = arith.constant dense<0.000000e+00> : vector<1xf32>
    %286 = vector.multi_reduction <add>, %285, %cst_62 [1] : vector<1x128xf32> to vector<1xf32>
    %287 = vector.shape_cast %286 : vector<1xf32> to vector<1x1xf32>
    %cst_63 = arith.constant 0.000000e+00 : f32
    %288 = vector.broadcast %cst_63 : f32 to vector<1x1xf32>
    %289 = arith.subf %288, %287 : vector<1x1xf32>
    %290 = vector.extract_strided_slice %146 {offsets = [7, 0], sizes = [1, 1], strides = [1, 1]} : vector<8x1xf32> to vector<1x1xf32>
    %291 = arith.addf %290, %289 : vector<1x1xf32>
    %292 = arith.negf %291 : vector<1x1xf32>
    %293 = math.exp %292 : vector<1x1xf32>
    %cst_64 = arith.constant 1.000000e+00 : f32
    %294 = vector.broadcast %cst_64 : f32 to vector<1x1xf32>
    %295 = arith.addf %294, %293 : vector<1x1xf32>
    %296 = arith.divf %294, %295 : vector<1x1xf32>
    %c7 = arith.constant 7 : index
    %c0_65 = arith.constant 0 : index
    %297 = vector.load %arg11[%c7, %c0_65] : memref<8x1xf32, #tpu.memory_space<vmem>>, vector<1x1xf32>
    tpu.vector_store %arg11[%c7, %c0_65], %296 {strides = array<i32>} : memref<8x1xf32, #tpu.memory_space<vmem>>, vector<1x1xf32>,
    return
  }
}

</mosaic_0001>

<llo_original>
// kernel: simple_runner_forward.1
$region0: #{simple_runner_forward.1}
  #allocation0 [shape = 'u32[]', space=smem, size = 0x4, offset = 0x4, fixed_abs, tag = 'smem constant byte address 0x4 - core index']
  #allocation1 [shape = 'u32[144,128]{1,0:T(1,128)}', space=vmem, size = 0x12000, scoped, tag = 'internal scratch']
  #allocation2 [shape = 'f32[1,1]{1,0:T(1,128)S(1)}', space=vmem, size = 0x200, scoped, tag = 'scoped memory for simple_runner_forward.1']
  %s0 = inlined_call_operand.vmem [shape: s32[8,16], index: 0, kind: input, shape index: {}]
  %s1 = inlined_call_operand.hbm [shape: f32[128,128], index: 1, kind: input, shape index: {}]
  %s2 = inlined_call_operand.hbm [shape: f32[128,128], index: 2, kind: input, shape index: {}]
  %s3 = inlined_call_operand.vmem [shape: f32[1,128], index: 3, kind: input, shape index: {}]
  %s4 = inlined_call_operand.hbm [shape: f32[128,128], index: 4, kind: input, shape index: {}]
  %s5 = inlined_call_operand.vmem [shape: f32[1,128], index: 5, kind: input, shape index: {}]
  %s6 = inlined_call_operand.hbm [shape: f32[128,128], index: 6, kind: input, shape index: {}]
  %s7 = inlined_call_operand.hbm [shape: f32[128,128], index: 7, kind: input, shape index: {}]
  %s8 = inlined_call_operand.vmem [shape: f32[1,128], index: 8, kind: input, shape index: {}]
  %s9 = inlined_call_operand.vmem [shape: f32[16,1], index: 9, kind: input, shape index: {}]
  %s10 = inlined_call_operand.<no memory space> [shape: f32[1,1], index: 10, kind: input, shape index: {}]
  %s11 = inlined_call_operand.vmem [shape: f32[8,1], index: 11, kind: output, shape index: {}]
  %s12 = sld [smem:[#allocation0]]
  $region74: #{simple_runner_forward.1} parent=0
    _
  %s14 = ssub.s32 1, %s12
  %s15 = scalar_select 0, %s14, %s12
  %v16 = vstv %s10
  %17 = vst [vmem:[#allocation2] sm:$0x1] %v16
  $region1: #{simple_runner_forward.1} parent=0
    #allocation3 [shape = 'u8[65536]{0}', space=vmem, size = 0x10000, scoped, tag = 'input window, operand 1, single buffered']
    #allocation4 [shape = 's32[1]{0}', space=sflag, size = 0x4, scoped, tag = 'scoped memory for simple_runner_forward.1']
    #allocation5 [shape = 'u8[65536]{0}', space=vmem, size = 0x10000, scoped, tag = 'input window, operand 2, single buffered']
    #allocation6 [shape = 's32[1]{0}', space=sflag, size = 0x4, scoped, tag = 'scoped memory for simple_runner_forward.1']
    #allocation7 [shape = 'u8[65536]{0}', space=vmem, size = 0x10000, scoped, tag = 'input window, operand 4, single buffered']
    #allocation8 [shape = 'u8[65536]{0}', space=vmem, size = 0x10000, scoped, tag = 'input window, operand 6, single buffered']
    #allocation9 [shape = 's32[1]{0}', space=sflag, size = 0x4, scoped, tag = 'scoped memory for simple_runner_forward.1']
    #allocation10 [shape = 'u8[65536]{0}', space=vmem, size = 0x10000, scoped, tag = 'input window, operand 7, single buffered']
    %18 = vsyncpa [#allocation4], 0
    %19 = vsyncpa [#allocation6], 0
    %20 = vsyncpa [#allocation9], 0
    // Predicated region
    $region2: #{simple_runner_forward.1} parent=1 // pred_check
      _
    $region3: #{simple_runner_forward.1} parent=1 // pred_check_branch
      %22 = sbr.rel (0) target = $region5
    $region4: #{simple_runner_forward.1} parent=1 // pred_region
      _
    $region5: #{simple_runner_forward.1} parent=1 // pred_fallthru
      _
    // Predicated region
    $region6: #{simple_runner_forward.1} parent=1 // pred_check
      _
    $region7: #{simple_runner_forward.1} parent=1 // pred_check_branch
      %24 = sbr.rel (0) target = $region9
    $region8: #{simple_runner_forward.1} parent=1 // pred_region
      %s26 = ssub.s32 2048, 2048
      %27 = vsyncadd [#allocation4], %s26
      %s28 = sshll.u32 [#allocation3], 4
      %s29 = int_to_ptr.vmem [resolvable:$true] %s28
      %34 = dma.hbm_to_vmem [thread:$0]  %s1, 2048, %s29, [#allocation4], 128, 128, 8
    $region9: #{simple_runner_forward.1} parent=1 // pred_fallthru
      _
    // Predicated region
    $region10: #{simple_runner_forward.1} parent=1 // pred_check
      _
    $region11: #{simple_runner_forward.1} parent=1 // pred_check_branch
      %36 = sbr.rel (0) target = $region13
    $region12: #{simple_runner_forward.1} parent=1 // pred_region
      %s38 = ssub.s32 2048, 2048
      %39 = vsyncadd [#allocation6], %s38
      %s40 = sshll.u32 [#allocation5], 4
      %s41 = int_to_ptr.vmem [resolvable:$true] %s40
      %46 = dma.hbm_to_vmem [thread:$0]  %s2, 2048, %s41, [#allocation6], 128, 128, 8
    $region13: #{simple_runner_forward.1} parent=1 // pred_fallthru
      _
    // Predicated region
    $region14: #{simple_runner_forward.1} parent=1 // pred_check
      _
    $region15: #{simple_runner_forward.1} parent=1 // pred_check_branch
      %48 = sbr.rel (0) target = $region17
    $region16: #{simple_runner_forward.1} parent=1 // pred_region
      _
    $region17: #{simple_runner_forward.1} parent=1 // pred_fallthru
      _
    // Predicated region
    $region18: #{simple_runner_forward.1} parent=1 // pred_check
      _
    $region19: #{simple_runner_forward.1} parent=1 // pred_check_branch
      %50 = sbr.rel (0) target = $region21
    $region20: #{simple_runner_forward.1} parent=1 // pred_region
      %s52 = ssub.s32 2048, 2048
      %53 = vsyncadd [#allocation6], %s52
      %s54 = sshll.u32 [#allocation7], 4
      %s55 = int_to_ptr.vmem [resolvable:$true] %s54
      %60 = dma.hbm_to_vmem [thread:$0]  %s4, 2048, %s55, [#allocation6], 128, 128, 8
    $region21: #{simple_runner_forward.1} parent=1 // pred_fallthru
      _
    // Predicated region
    $region22: #{simple_runner_forward.1} parent=1 // pred_check
      _
    $region23: #{simple_runner_forward.1} parent=1 // pred_check_branch
      %62 = sbr.rel (0) target = $region25
    $region24: #{simple_runner_forward.1} parent=1 // pred_region
      _
    $region25: #{simple_runner_forward.1} parent=1 // pred_fallthru
      _
    // Predicated region
    $region26: #{simple_runner_forward.1} parent=1 // pred_check
      _
    $region27: #{simple_runner_forward.1} parent=1 // pred_check_branch
      %64 = sbr.rel (0) target = $region29
    $region28: #{simple_runner_forward.1} parent=1 // pred_region
      %s66 = ssub.s32 2048, 2048
      %67 = vsyncadd [#allocation9], %s66
      %s68 = sshll.u32 [#allocation8], 4
      %s69 = int_to_ptr.vmem [resolvable:$true] %s68
      %74 = dma.hbm_to_vmem [thread:$0]  %s6, 2048, %s69, [#allocation9], 128, 128, 8
    $region29: #{simple_runner_forward.1} parent=1 // pred_fallthru
      _
    // Predicated region
    $region30: #{simple_runner_forward.1} parent=1 // pred_check
      _
    $region31: #{simple_runner_forward.1} parent=1 // pred_check_branch
      %76 = sbr.rel (0) target = $region33
    $region32: #{simple_runner_forward.1} parent=1 // pred_region
      %s78 = ssub.s32 2048, 2048
      %79 = vsyncadd [#allocation9], %s78
      %s80 = sshll.u32 [#allocation10], 4
      %s81 = int_to_ptr.vmem [resolvable:$true] %s80
      %86 = dma.hbm_to_vmem [thread:$0]  %s7, 2048, %s81, [#allocation9], 128, 128, 8
    $region33: #{simple_runner_forward.1} parent=1 // pred_fallthru
      _
    // Predicated region
    $region34: #{simple_runner_forward.1} parent=1 // pred_check
      _
    $region35: #{simple_runner_forward.1} parent=1 // pred_check_branch
      %88 = sbr.rel (0) target = $region37
    $region36: #{simple_runner_forward.1} parent=1 // pred_region
      _
    $region37: #{simple_runner_forward.1} parent=1 // pred_fallthru
      _
    // Predicated region
    $region38: #{simple_runner_forward.1} parent=1 // pred_check
      _
    $region39: #{simple_runner_forward.1} parent=1 // pred_check_branch
      %90 = sbr.rel (0) target = $region41
    $region40: #{simple_runner_forward.1} parent=1 // pred_region
      _
    $region41: #{simple_runner_forward.1} parent=1 // pred_fallthru
      _
    // Predicated region
    $region42: #{simple_runner_forward.1} parent=1 // pred_check
      _
    $region43: #{simple_runner_forward.1} parent=1 // pred_check_branch
      %92 = sbr.rel (0) target = $region45
    $region44: #{simple_runner_forward.1} parent=1 // pred_region
      _
    $region45: #{simple_runner_forward.1} parent=1 // pred_fallthru
      _
    // Predicated region
    $region46: #{simple_runner_forward.1} parent=1 // pred_check
      _
    $region47: #{simple_runner_forward.1} parent=1 // pred_check_branch
      %94 = sbr.rel (0) target = $region49
    $region48: #{simple_runner_forward.1} parent=1 // pred_region
      %95 = dma.done [#allocation4], 2048
    $region49: #{simple_runner_forward.1} parent=1 // pred_fallthru
      _
    // Predicated region
    $region50: #{simple_runner_forward.1} parent=1 // pred_check
      _
    $region51: #{simple_runner_forward.1} parent=1 // pred_check_branch
      %97 = sbr.rel (0) target = $region53
    $region52: #{simple_runner_forward.1} parent=1 // pred_region
      %98 = dma.done [#allocation6], 2048
    $region53: #{simple_runner_forward.1} parent=1 // pred_fallthru
      _
    // Predicated region
    $region54: #{simple_runner_forward.1} parent=1 // pred_check
      _
    $region55: #{simple_runner_forward.1} parent=1 // pred_check_branch
      %100 = sbr.rel (0) target = $region57
    $region56: #{simple_runner_forward.1} parent=1 // pred_region
      %101 = dma.done [#allocation6], 2048
    $region57: #{simple_runner_forward.1} parent=1 // pred_fallthru
      _
    // Predicated region
    $region58: #{simple_runner_forward.1} parent=1 // pred_check
      _
    $region59: #{simple_runner_forward.1} parent=1 // pred_check_branch
      %103 = sbr.rel (0) target = $region61
    $region60: #{simple_runner_forward.1} parent=1 // pred_region
      %104 = dma.done [#allocation9], 2048
    $region61: #{simple_runner_forward.1} parent=1 // pred_fallthru
      _
    // Predicated region
    $region62: #{simple_runner_forward.1} parent=1 // pred_check
      _
    $region63: #{simple_runner_forward.1} parent=1 // pred_check_branch
      %106 = sbr.rel (0) target = $region65
    $region64: #{simple_runner_forward.1} parent=1 // pred_region
      %107 = dma.done [#allocation9], 2048
    $region65: #{simple_runner_forward.1} parent=1 // pred_fallthru
      _
    %v108 = vld [vmem:[%s0] sm:$0xff]
    %vm109 = vcmp.gt.s32.totalorder %v108, 0
    %v110 = vsel %vm109, 1, 0
    %v111 = vcvt.s32.f32 %v110
    %vm112 = vcmask 130048
    %v113 = vsel %vm112, %v111, 0.0
    %114 = vadd.xlane.f32.xlu0 %v113
    %v115 = vpop.xlane.xlu0 %114
    %v116 = vlaneseq
    %v117 = vand.u32 %v116, 127
    %v118 = vcvt.f32.s32.to.zero.pseudo %v115
    %vm119 = vcmp.lt.s32.totalorder %v117, %v118
    %v120 = vsel %vm119, %v108, 4294967295
    %121 = vset.pattern.permute.xlu0 0
    %122 = vperm.xlu0 %121, %v120
    %v123 = vpop.permute.xlu0 %122
    %vm124 = vcmp.eq.s32.totalorder %v123, %v117
    %v125 = vsel %vm124, 1, 0
    %v126 = vcvt.s32.f32 %v125
    %v127 = vadd.f32 %v126, 0.0
    %128 = vset.pattern.permute.xlu0 1
    %129 = vperm.xlu0 %128, %v120
    %v130 = vpop.permute.xlu0 %129
    %vm131 = vcmp.eq.s32.totalorder %v130, %v117
    %v132 = vsel %vm131, 1, 0
    %v133 = vcvt.s32.f32 %v132
    %v134 = vadd.f32 %v127, %v133
    %135 = vset.pattern.permute.xlu0 2
    %136 = vperm.xlu0 %135, %v120
    %v137 = vpop.permute.xlu0 %136
    %vm138 = vcmp.eq.s32.totalorder %v137, %v117
    %v139 = vsel %vm138, 1, 0
    %v140 = vcvt.s32.f32 %v139
    %v141 = vadd.f32 %v134, %v140
    %142 = vset.pattern.permute.xlu0 3
    %143 = vperm.xlu0 %142, %v120
    %v144 = vpop.permute.xlu0 %143
    %vm145 = vcmp.eq.s32.totalorder %v144, %v117
    %v146 = vsel %vm145, 1, 0
    %v147 = vcvt.s32.f32 %v146
    %v148 = vadd.f32 %v141, %v147
    %149 = vset.pattern.permute.xlu0 4
    %150 = vperm.xlu0 %149, %v120
    %v151 = vpop.permute.xlu0 %150
    %vm152 = vcmp.eq.s32.totalorder %v151, %v117
    %v153 = vsel %vm152, 1, 0
    %v154 = vcvt.s32.f32 %v153
    %v155 = vadd.f32 %v148, %v154
    %156 = vset.pattern.permute.xlu0 5
    %157 = vperm.xlu0 %156, %v120
    %v158 = vpop.permute.xlu0 %157
    %vm159 = vcmp.eq.s32.totalorder %v158, %v117
    %v160 = vsel %vm159, 1, 0
    %v161 = vcvt.s32.f32 %v160
    %v162 = vadd.f32 %v155, %v161
    %163 = vset.pattern.permute.xlu0 6
    %164 = vperm.xlu0 %163, %v120
    %v165 = vpop.permute.xlu0 %164
    %vm166 = vcmp.eq.s32.totalorder %v165, %v117
    %v167 = vsel %vm166, 1, 0
    %v168 = vcvt.s32.f32 %v167
    %v169 = vadd.f32 %v162, %v168
    %170 = vset.pattern.permute.xlu0 7
    %171 = vperm.xlu0 %170, %v120
    %v172 = vpop.permute.xlu0 %171
    %vm173 = vcmp.eq.s32.totalorder %v172, %v117
    %v174 = vsel %vm173, 1, 0
    %v175 = vcvt.s32.f32 %v174
    %v176 = vadd.f32 %v169, %v175
    %177 = vset.pattern.permute.xlu0 8
    %178 = vperm.xlu0 %177, %v120
    %v179 = vpop.permute.xlu0 %178
    %vm180 = vcmp.eq.s32.totalorder %v179, %v117
    %v181 = vsel %vm180, 1, 0
    %v182 = vcvt.s32.f32 %v181
    %v183 = vadd.f32 %v176, %v182
    %184 = vset.pattern.permute.xlu0 9
    %185 = vperm.xlu0 %184, %v120
    %v186 = vpop.permute.xlu0 %185
    %vm187 = vcmp.eq.s32.totalorder %v186, %v117
    %v188 = vsel %vm187, 1, 0
    %v189 = vcvt.s32.f32 %v188
    %v190 = vadd.f32 %v183, %v189
    %191 = vset.pattern.permute.xlu0 10
    %192 = vperm.xlu0 %191, %v120
    %v193 = vpop.permute.xlu0 %192
    %vm194 = vcmp.eq.s32.totalorder %v193, %v117
    %v195 = vsel %vm194, 1, 0
    %v196 = vcvt.s32.f32 %v195
    %v197 = vadd.f32 %v190, %v196
    %198 = vset.pattern.permute.xlu0 11
    %199 = vperm.xlu0 %198, %v120
    %v200 = vpop.permute.xlu0 %199
    %vm201 = vcmp.eq.s32.totalorder %v200, %v117
    %v202 = vsel %vm201, 1, 0
    %v203 = vcvt.s32.f32 %v202
    %v204 = vadd.f32 %v197, %v203
    %205 = vset.pattern.permute.xlu0 12
    %206 = vperm.xlu0 %205, %v120
    %v207 = vpop.permute.xlu0 %206
    %vm208 = vcmp.eq.s32.totalorder %v207, %v117
    %v209 = vsel %vm208, 1, 0
    %v210 = vcvt.s32.f32 %v209
    %v211 = vadd.f32 %v204, %v210
    %212 = vset.pattern.permute.xlu0 13
    %213 = vperm.xlu0 %212, %v120
    %v214 = vpop.permute.xlu0 %213
    %vm215 = vcmp.eq.s32.totalorder %v214, %v117
    %v216 = vsel %vm215, 1, 0
    %v217 = vcvt.s32.f32 %v216
    %v218 = vadd.f32 %v211, %v217
    %219 = vset.pattern.permute.xlu0 14
    %220 = vperm.xlu0 %219, %v120
    %v221 = vpop.permute.xlu0 %220
    %vm222 = vcmp.eq.s32.totalorder %v221, %v117
    %v223 = vsel %vm222, 1, 0
    %v224 = vcvt.s32.f32 %v223
    %v225 = vadd.f32 %v218, %v224
    %226 = vset.pattern.permute.xlu0 15
    %227 = vperm.xlu0 %226, %v120
    %v228 = vpop.permute.xlu0 %227
    %vm229 = vcmp.eq.s32.totalorder %v228, %v117
    %v230 = vsel %vm229, 1, 0
    %v231 = vcvt.s32.f32 %v230
    %v232 = vadd.f32 %v225, %v231
    %v233 = vmax.f32 %v115, 1.0
    %v234 = vrcp.pop %v233
    %v235 = vmul.f32 1.0, %v234
    %v236 = vld [vmem:[#allocation3] sm:$0xff]
    %v237 = vld [vmem:[#allocation3 + $0x8] sm:$0xff]
    %v238 = vld [vmem:[#allocation3 + $0x10] sm:$0xff]
    %v239 = vld [vmem:[#allocation3 + $0x18] sm:$0xff]
    %v240 = vld [vmem:[#allocation3 + $0x20] sm:$0xff]
    %v241 = vld [vmem:[#allocation3 + $0x28] sm:$0xff]
    %v242 = vld [vmem:[#allocation3 + $0x30] sm:$0xff]
    %v243 = vld [vmem:[#allocation3 + $0x38] sm:$0xff]
    %v244 = vld [vmem:[#allocation3 + $0x40] sm:$0xff]
    %v245 = vld [vmem:[#allocation3 + $0x48] sm:$0xff]
    %v246 = vld [vmem:[#allocation3 + $0x50] sm:$0xff]
    %v247 = vld [vmem:[#allocation3 + $0x58] sm:$0xff]
    %v248 = vld [vmem:[#allocation3 + $0x60] sm:$0xff]
    %v249 = vld [vmem:[#allocation3 + $0x68] sm:$0xff]
    %v250 = vld [vmem:[#allocation3 + $0x70] sm:$0xff]
    %v251 = vld [vmem:[#allocation3 + $0x78] sm:$0xff]
    %252 = vmatprep.subr.mxu0 0.0
    %253 = vmatpush1.msra.mxu0 %v236
    %254 = vmatprep.subr.mxu0 0.0
    %255 = vmatpush1.msra.mxu0 %v237
    %256 = vmatprep.subr.mxu0 0.0
    %257 = vmatpush1.msra.mxu0 %v238
    %258 = vmatprep.subr.mxu0 0.0
    %259 = vmatpush1.msra.mxu0 %v239
    %260 = vmatprep.subr.mxu0 0.0
    %261 = vmatpush1.msra.mxu0 %v240
    %262 = vmatprep.subr.mxu0 0.0
    %263 = vmatpush1.msra.mxu0 %v241
    %264 = vmatprep.subr.mxu0 0.0
    %265 = vmatpush1.msra.mxu0 %v242
    %266 = vmatprep.subr.mxu0 0.0
    %267 = vmatpush1.msra.mxu0 %v243
    %268 = vmatprep.subr.mxu0 0.0
    %269 = vmatpush1.msra.mxu0 %v244
    %270 = vmatprep.subr.mxu0 0.0
    %271 = vmatpush1.msra.mxu0 %v245
    %272 = vmatprep.subr.mxu0 0.0
    %273 = vmatpush1.msra.mxu0 %v246
    %274 = vmatprep.subr.mxu0 0.0
    %275 = vmatpush1.msra.mxu0 %v247
    %276 = vmatprep.subr.mxu0 0.0
    %277 = vmatpush1.msra.mxu0 %v248
    %278 = vmatprep.subr.mxu0 0.0
    %279 = vmatpush1.msra.mxu0 %v249
    %280 = vmatprep.subr.mxu0 0.0
    %281 = vmatpush1.msra.mxu0 %v250
    %282 = vmatprep.subr.mxu0 0.0
    %283 = vmatpush1.msra.mxu0 %v251
    %284 = vmatprep.subr.mxu0 0.0
    %285 = vmatpush1.msra.mxu0 0.0
    %286 = vmatprep.subr.mxu0 0.0
    %287 = vmatpush1.msra.mxu0 0.0
    %288 = vmatprep.subr.mxu0 0.0
    %289 = vmatpush1.msra.mxu0 0.0
    %290 = vmatprep.subr.mxu0 0.0
    %291 = vmatpush1.msra.mxu0 0.0
    %292 = vmatprep.subr.mxu0 0.0
    %293 = vmatpush1.msra.mxu0 0.0
    %294 = vmatprep.subr.mxu0 0.0
    %295 = vmatpush1.msra.mxu0 0.0
    %296 = vmatprep.subr.mxu0 0.0
    %297 = vmatpush1.msra.mxu0 0.0
    %298 = vmatprep.subr.mxu0 0.0
    %299 = vmatpush1.msra.mxu0 0.0
    %300 = vmatprep.subr.mxu0 0.0
    %301 = vmatpush1.msra.mxu0 0.0
    %302 = vmatprep.subr.mxu0 0.0
    %303 = vmatpush1.msra.mxu0 0.0
    %304 = vmatprep.subr.mxu0 0.0
    %305 = vmatpush1.msra.mxu0 0.0
    %306 = vmatprep.subr.mxu0 0.0
    %307 = vmatpush1.msra.mxu0 0.0
    %308 = vmatprep.subr.mxu0 0.0
    %309 = vmatpush1.msra.mxu0 0.0
    %310 = vmatprep.subr.mxu0 0.0
    %311 = vmatpush1.msra.mxu0 0.0
    %312 = vmatprep.subr.mxu0 0.0
    %313 = vmatpush1.msra.mxu0 0.0
    %314 = vmatprep.subr.mxu0 0.0
    %315 = vmatpush1.msra.mxu0 0.0
    %316 = vmatprep.mubr.f32.mxu0 0.0
    %317 = vmatmul.mubr.f32.gmra.mrb[0].mxu0 %v232
    %v318 = vpop.f32.mrb[0].mxu0
    %v319 = vadd.f32 0.0, %v318
    %v320 = vpop.f32.mrb[0].mxu0
    %321 = vdwg.mxu0
    %v322 = vmul.f32 %v319, %v235
    %v323 = vrot.slane %v322, 4
    %v324 = vadd.f32 %v322, %v323
    %v325 = vrot.slane %v324, 2
    %v326 = vadd.f32 %v324, %v325
    %v327 = vrot.slane %v326, 1
    %v328 = vadd.f32 %v326, %v327
    %v329 = vrcp.pop 8.0
    %v330 = vmul.f32 %v328, %v329
    %v331 = vld [vmem:[#allocation5] sm:$0xff]
    %v332 = vld [vmem:[#allocation5 + $0x8] sm:$0xff]
    %v333 = vld [vmem:[#allocation5 + $0x10] sm:$0xff]
    %v334 = vld [vmem:[#allocation5 + $0x18] sm:$0xff]
    %v335 = vld [vmem:[#allocation5 + $0x20] sm:$0xff]
    %v336 = vld [vmem:[#allocation5 + $0x28] sm:$0xff]
    %v337 = vld [vmem:[#allocation5 + $0x30] sm:$0xff]
    %v338 = vld [vmem:[#allocation5 + $0x38] sm:$0xff]
    %v339 = vld [vmem:[#allocation5 + $0x40] sm:$0xff]
    %v340 = vld [vmem:[#allocation5 + $0x48] sm:$0xff]
    %v341 = vld [vmem:[#allocation5 + $0x50] sm:$0xff]
    %v342 = vld [vmem:[#allocation5 + $0x58] sm:$0xff]
    %v343 = vld [vmem:[#allocation5 + $0x60] sm:$0xff]
    %v344 = vld [vmem:[#allocation5 + $0x68] sm:$0xff]
    %v345 = vld [vmem:[#allocation5 + $0x70] sm:$0xff]
    %v346 = vld [vmem:[#allocation5 + $0x78] sm:$0xff]
    %v347 = vld [vmem:[%s3] sm:$0x1]
    %348 = vmatprep.subr.mxu0 0.0
    %349 = vmatpush1.msra.mxu0 %v331
    %350 = vmatprep.subr.mxu0 0.0
    %351 = vmatpush1.msra.mxu0 %v332
    %352 = vmatprep.subr.mxu0 0.0
    %353 = vmatpush1.msra.mxu0 %v333
    %354 = vmatprep.subr.mxu0 0.0
    %355 = vmatpush1.msra.mxu0 %v334
    %356 = vmatprep.subr.mxu0 0.0
    %357 = vmatpush1.msra.mxu0 %v335
    %358 = vmatprep.subr.mxu0 0.0
    %359 = vmatpush1.msra.mxu0 %v336
    %360 = vmatprep.subr.mxu0 0.0
    %361 = vmatpush1.msra.mxu0 %v337
    %362 = vmatprep.subr.mxu0 0.0
    %363 = vmatpush1.msra.mxu0 %v338
    %364 = vmatprep.subr.mxu0 0.0
    %365 = vmatpush1.msra.mxu0 %v339
    %366 = vmatprep.subr.mxu0 0.0
    %367 = vmatpush1.msra.mxu0 %v340
    %368 = vmatprep.subr.mxu0 0.0
    %369 = vmatpush1.msra.mxu0 %v341
    %370 = vmatprep.subr.mxu0 0.0
    %371 = vmatpush1.msra.mxu0 %v342
    %372 = vmatprep.subr.mxu0 0.0
    %373 = vmatpush1.msra.mxu0 %v343
    %374 = vmatprep.subr.mxu0 0.0
    %375 = vmatpush1.msra.mxu0 %v344
    %376 = vmatprep.subr.mxu0 0.0
    %377 = vmatpush1.msra.mxu0 %v345
    %378 = vmatprep.subr.mxu0 0.0
    %379 = vmatpush1.msra.mxu0 %v346
    %380 = vmatprep.subr.mxu0 0.0
    %381 = vmatpush1.msra.mxu0 0.0
    %382 = vmatprep.subr.mxu0 0.0
    %383 = vmatpush1.msra.mxu0 0.0
    %384 = vmatprep.subr.mxu0 0.0
    %385 = vmatpush1.msra.mxu0 0.0
    %386 = vmatprep.subr.mxu0 0.0
    %387 = vmatpush1.msra.mxu0 0.0
    %388 = vmatprep.subr.mxu0 0.0
    %389 = vmatpush1.msra.mxu0 0.0
    %390 = vmatprep.subr.mxu0 0.0
    %391 = vmatpush1.msra.mxu0 0.0
    %392 = vmatprep.subr.mxu0 0.0
    %393 = vmatpush1.msra.mxu0 0.0
    %394 = vmatprep.subr.mxu0 0.0
    %395 = vmatpush1.msra.mxu0 0.0
    %396 = vmatprep.subr.mxu0 0.0
    %397 = vmatpush1.msra.mxu0 0.0
    %398 = vmatprep.subr.mxu0 0.0
    %399 = vmatpush1.msra.mxu0 0.0
    %400 = vmatprep.subr.mxu0 0.0
    %401 = vmatpush1.msra.mxu0 0.0
    %402 = vmatprep.subr.mxu0 0.0
    %403 = vmatpush1.msra.mxu0 0.0
    %404 = vmatprep.subr.mxu0 0.0
    %405 = vmatpush1.msra.mxu0 0.0
    %406 = vmatprep.subr.mxu0 0.0
    %407 = vmatpush1.msra.mxu0 0.0
    %408 = vmatprep.subr.mxu0 0.0
    %409 = vmatpush1.msra.mxu0 0.0
    %410 = vmatprep.subr.mxu0 0.0
    %411 = vmatpush1.msra.mxu0 0.0
    %412 = vmatprep.mubr.f32.mxu0 0.0
    %413 = vmatmul.mubr.f32.gmra.mrb[0].mxu0 %v330
    %v414 = vpop.f32.mrb[0].mxu0
    %v415 = vadd.f32 %v347, %v414
    %v416 = vpop.f32.mrb[0].mxu0
    %417 = vdwg.mxu0
    %v418 = vtanh.pop %v415
    %v419 = vld [vmem:[#allocation7] sm:$0xff]
    %v420 = vld [vmem:[#allocation7 + $0x8] sm:$0xff]
    %v421 = vld [vmem:[#allocation7 + $0x10] sm:$0xff]
    %v422 = vld [vmem:[#allocation7 + $0x18] sm:$0xff]
    %v423 = vld [vmem:[#allocation7 + $0x20] sm:$0xff]
    %v424 = vld [vmem:[#allocation7 + $0x28] sm:$0xff]
    %v425 = vld [vmem:[#allocation7 + $0x30] sm:$0xff]
    %v426 = vld [vmem:[#allocation7 + $0x38] sm:$0xff]
    %v427 = vld [vmem:[#allocation7 + $0x40] sm:$0xff]
    %v428 = vld [vmem:[#allocation7 + $0x48] sm:$0xff]
    %v429 = vld [vmem:[#allocation7 + $0x50] sm:$0xff]
    %v430 = vld [vmem:[#allocation7 + $0x58] sm:$0xff]
    %v431 = vld [vmem:[#allocation7 + $0x60] sm:$0xff]
    %v432 = vld [vmem:[#allocation7 + $0x68] sm:$0xff]
    %v433 = vld [vmem:[#allocation7 + $0x70] sm:$0xff]
    %v434 = vld [vmem:[#allocation7 + $0x78] sm:$0xff]
    %v435 = vld [vmem:[%s5] sm:$0x1]
    %v437 = vlaneseq
    %v438 = vshrl.u32 %v437, 7
    %v439 = vsub.s32 0, %v438
    %v440 = vrot.slane %v435, %v439
    %442 = vmatprep.subr.mxu0 0.0
    %443 = vmatpush1.msra.mxu0 %v419
    %444 = vmatprep.subr.mxu0 0.0
    %445 = vmatpush1.msra.mxu0 %v420
    %446 = vmatprep.subr.mxu0 0.0
    %447 = vmatpush1.msra.mxu0 %v421
    %448 = vmatprep.subr.mxu0 0.0
    %449 = vmatpush1.msra.mxu0 %v422
    %450 = vmatprep.subr.mxu0 0.0
    %451 = vmatpush1.msra.mxu0 %v423
    %452 = vmatprep.subr.mxu0 0.0
    %453 = vmatpush1.msra.mxu0 %v424
    %454 = vmatprep.subr.mxu0 0.0
    %455 = vmatpush1.msra.mxu0 %v425
    %456 = vmatprep.subr.mxu0 0.0
    %457 = vmatpush1.msra.mxu0 %v426
    %458 = vmatprep.subr.mxu0 0.0
    %459 = vmatpush1.msra.mxu0 %v427
    %460 = vmatprep.subr.mxu0 0.0
    %461 = vmatpush1.msra.mxu0 %v428
    %462 = vmatprep.subr.mxu0 0.0
    %463 = vmatpush1.msra.mxu0 %v429
    %464 = vmatprep.subr.mxu0 0.0
    %465 = vmatpush1.msra.mxu0 %v430
    %466 = vmatprep.subr.mxu0 0.0
    %467 = vmatpush1.msra.mxu0 %v431
    %468 = vmatprep.subr.mxu0 0.0
    %469 = vmatpush1.msra.mxu0 %v432
    %470 = vmatprep.subr.mxu0 0.0
    %471 = vmatpush1.msra.mxu0 %v433
    %472 = vmatprep.subr.mxu0 0.0
    %473 = vmatpush1.msra.mxu0 %v434
    %474 = vmatprep.subr.mxu0 0.0
    %475 = vmatpush1.msra.mxu0 0.0
    %476 = vmatprep.subr.mxu0 0.0
    %477 = vmatpush1.msra.mxu0 0.0
    %478 = vmatprep.subr.mxu0 0.0
    %479 = vmatpush1.msra.mxu0 0.0
    %480 = vmatprep.subr.mxu0 0.0
    %481 = vmatpush1.msra.mxu0 0.0
    %482 = vmatprep.subr.mxu0 0.0
    %483 = vmatpush1.msra.mxu0 0.0
    %484 = vmatprep.subr.mxu0 0.0
    %485 = vmatpush1.msra.mxu0 0.0
    %486 = vmatprep.subr.mxu0 0.0
    %487 = vmatpush1.msra.mxu0 0.0
    %488 = vmatprep.subr.mxu0 0.0
    %489 = vmatpush1.msra.mxu0 0.0
    %490 = vmatprep.subr.mxu0 0.0
    %491 = vmatpush1.msra.mxu0 0.0
    %492 = vmatprep.subr.mxu0 0.0
    %493 = vmatpush1.msra.mxu0 0.0
    %494 = vmatprep.subr.mxu0 0.0
    %495 = vmatpush1.msra.mxu0 0.0
    %496 = vmatprep.subr.mxu0 0.0
    %497 = vmatpush1.msra.mxu0 0.0
    %498 = vmatprep.subr.mxu0 0.0
    %499 = vmatpush1.msra.mxu0 0.0
    %500 = vmatprep.subr.mxu0 0.0
    %501 = vmatpush1.msra.mxu0 0.0
    %502 = vmatprep.subr.mxu0 0.0
    %503 = vmatpush1.msra.mxu0 0.0
    %504 = vmatprep.subr.mxu0 0.0
    %505 = vmatpush1.msra.mxu0 0.0
    %506 = vmatprep.mubr.f32.mxu0 0.0
    %507 = vmatmul.mubr.f32.gmra.mrb[0].mxu0 %v322
    %v508 = vpop.f32.mrb[0].mxu0
    %v509 = vadd.f32 %v440, %v508
    %v510 = vpop.f32.mrb[0].mxu0
    %511 = vdwg.mxu0
    %v512 = vtanh.pop %v509
    %v513 = vld [vmem:[%s8] sm:$0x1]
    %v514 = vld [vmem:[#allocation8] sm:$0xff]
    %v515 = vld [vmem:[#allocation8 + $0x8] sm:$0xff]
    %v516 = vld [vmem:[#allocation8 + $0x10] sm:$0xff]
    %v517 = vld [vmem:[#allocation8 + $0x18] sm:$0xff]
    %v518 = vld [vmem:[#allocation8 + $0x20] sm:$0xff]
    %v519 = vld [vmem:[#allocation8 + $0x28] sm:$0xff]
    %v520 = vld [vmem:[#allocation8 + $0x30] sm:$0xff]
    %v521 = vld [vmem:[#allocation8 + $0x38] sm:$0xff]
    %v522 = vld [vmem:[#allocation8 + $0x40] sm:$0xff]
    %v523 = vld [vmem:[#allocation8 + $0x48] sm:$0xff]
    %v524 = vld [vmem:[#allocation8 + $0x50] sm:$0xff]
    %v525 = vld [vmem:[#allocation8 + $0x58] sm:$0xff]
    %v526 = vld [vmem:[#allocation8 + $0x60] sm:$0xff]
    %v527 = vld [vmem:[#allocation8 + $0x68] sm:$0xff]
    %v528 = vld [vmem:[#allocation8 + $0x70] sm:$0xff]
    %v529 = vld [vmem:[#allocation8 + $0x78] sm:$0xff]
    %530 = vmatprep.subr.mxu0 0.0
    %531 = vmatpush1.msra.mxu0 %v514
    %532 = vmatprep.subr.mxu0 0.0
    %533 = vmatpush1.msra.mxu0 %v515
    %534 = vmatprep.subr.mxu0 0.0
    %535 = vmatpush1.msra.mxu0 %v516
    %536 = vmatprep.subr.mxu0 0.0
    %537 = vmatpush1.msra.mxu0 %v517
    %538 = vmatprep.subr.mxu0 0.0
    %539 = vmatpush1.msra.mxu0 %v518
    %540 = vmatprep.subr.mxu0 0.0
    %541 = vmatpush1.msra.mxu0 %v519
    %542 = vmatprep.subr.mxu0 0.0
    %543 = vmatpush1.msra.mxu0 %v520
    %544 = vmatprep.subr.mxu0 0.0
    %545 = vmatpush1.msra.mxu0 %v521
    %546 = vmatprep.subr.mxu0 0.0
    %547 = vmatpush1.msra.mxu0 %v522
    %548 = vmatprep.subr.mxu0 0.0
    %549 = vmatpush1.msra.mxu0 %v523
    %550 = vmatprep.subr.mxu0 0.0
    %551 = vmatpush1.msra.mxu0 %v524
    %552 = vmatprep.subr.mxu0 0.0
    %553 = vmatpush1.msra.mxu0 %v525
    %554 = vmatprep.subr.mxu0 0.0
    %555 = vmatpush1.msra.mxu0 %v526
    %556 = vmatprep.subr.mxu0 0.0
    %557 = vmatpush1.msra.mxu0 %v527
    %558 = vmatprep.subr.mxu0 0.0
    %559 = vmatpush1.msra.mxu0 %v528
    %560 = vmatprep.subr.mxu0 0.0
    %561 = vmatpush1.msra.mxu0 %v529
    %562 = vmatprep.subr.mxu0 0.0
    %563 = vmatpush1.msra.mxu0 0.0
    %564 = vmatprep.subr.mxu0 0.0
    %565 = vmatpush1.msra.mxu0 0.0
    %566 = vmatprep.subr.mxu0 0.0
    %567 = vmatpush1.msra.mxu0 0.0
    %568 = vmatprep.subr.mxu0 0.0
    %569 = vmatpush1.msra.mxu0 0.0
    %570 = vmatprep.subr.mxu0 0.0
    %571 = vmatpush1.msra.mxu0 0.0
    %572 = vmatprep.subr.mxu0 0.0
    %573 = vmatpush1.msra.mxu0 0.0
    %574 = vmatprep.subr.mxu0 0.0
    %575 = vmatpush1.msra.mxu0 0.0
    %576 = vmatprep.subr.mxu0 0.0
    %577 = vmatpush1.msra.mxu0 0.0
    %578 = vmatprep.subr.mxu0 0.0
    %579 = vmatpush1.msra.mxu0 0.0
    %580 = vmatprep.subr.mxu0 0.0
    %581 = vmatpush1.msra.mxu0 0.0
    %582 = vmatprep.subr.mxu0 0.0
    %583 = vmatpush1.msra.mxu0 0.0
    %584 = vmatprep.subr.mxu0 0.0
    %585 = vmatpush1.msra.mxu0 0.0
    %586 = vmatprep.subr.mxu0 0.0
    %587 = vmatpush1.msra.mxu0 0.0
    %588 = vmatprep.subr.mxu0 0.0
    %589 = vmatpush1.msra.mxu0 0.0
    %590 = vmatprep.subr.mxu0 0.0
    %591 = vmatpush1.msra.mxu0 0.0
    %592 = vmatprep.subr.mxu0 0.0
    %593 = vmatpush1.msra.mxu0 0.0
    %594 = vmatprep.mubr.f32.mxu0 0.0
    %595 = vmatmul.mubr.f32.gmra.mrb[0].mxu0 %v418
    %v596 = vpop.f32.mrb[0].mxu0
    %v597 = vadd.f32 0.0, %v596
    %v598 = vpop.f32.mrb[0].mxu0
    %599 = vdwg.mxu0
    %v600 = vadd.f32 %v513, %v597
    %v602 = vlaneseq
    %v603 = vshrl.u32 %v602, 7
    %v604 = vsub.s32 0, %v603
    %v605 = vrot.slane %v600, %v604
    %v607 = vmul.f32 %v512, %v605
    %608 = vadd.xlane.f32.xlu0 %v607
    %v609 = vpop.xlane.xlu0 %608
    %v610 = vld [vmem:[%s9] sm:$0xff]
    %v611 = vadd.f32 %v609, %v610
    %v612 = vld [vmem:[#allocation2] sm:$0x1]
    %v614 = vlaneseq
    %v615 = vshrl.u32 %v614, 7
    %v616 = vsub.s32 0, %v615
    %v617 = vrot.slane %v612, %v616
    %v619 = vadd.f32 %v611, %v617
    %v620 = vld [vmem:[#allocation10] sm:$0xff]
    %v621 = vld [vmem:[#allocation10 + $0x8] sm:$0xff]
    %v622 = vld [vmem:[#allocation10 + $0x10] sm:$0xff]
    %v623 = vld [vmem:[#allocation10 + $0x18] sm:$0xff]
    %v624 = vld [vmem:[#allocation10 + $0x20] sm:$0xff]
    %v625 = vld [vmem:[#allocation10 + $0x28] sm:$0xff]
    %v626 = vld [vmem:[#allocation10 + $0x30] sm:$0xff]
    %v627 = vld [vmem:[#allocation10 + $0x38] sm:$0xff]
    %v628 = vld [vmem:[#allocation10 + $0x40] sm:$0xff]
    %v629 = vld [vmem:[#allocation10 + $0x48] sm:$0xff]
    %v630 = vld [vmem:[#allocation10 + $0x50] sm:$0xff]
    %v631 = vld [vmem:[#allocation10 + $0x58] sm:$0xff]
    %v632 = vld [vmem:[#allocation10 + $0x60] sm:$0xff]
    %v633 = vld [vmem:[#allocation10 + $0x68] sm:$0xff]
    %v634 = vld [vmem:[#allocation10 + $0x70] sm:$0xff]
    %v635 = vld [vmem:[#allocation10 + $0x78] sm:$0xff]
    %636 = vmatprep.subr.mxu0 0.0
    %637 = vmatpush1.msra.mxu0 %v620
    %638 = vmatprep.subr.mxu0 0.0
    %639 = vmatpush1.msra.mxu0 %v621
    %640 = vmatprep.subr.mxu0 0.0
    %641 = vmatpush1.msra.mxu0 %v622
    %642 = vmatprep.subr.mxu0 0.0
    %643 = vmatpush1.msra.mxu0 %v623
    %644 = vmatprep.subr.mxu0 0.0
    %645 = vmatpush1.msra.mxu0 %v624
    %646 = vmatprep.subr.mxu0 0.0
    %647 = vmatpush1.msra.mxu0 %v625
    %648 = vmatprep.subr.mxu0 0.0
    %649 = vmatpush1.msra.mxu0 %v626
    %650 = vmatprep.subr.mxu0 0.0
    %651 = vmatpush1.msra.mxu0 %v627
    %652 = vmatprep.subr.mxu0 0.0
    %653 = vmatpush1.msra.mxu0 %v628
    %654 = vmatprep.subr.mxu0 0.0
    %655 = vmatpush1.msra.mxu0 %v629
    %656 = vmatprep.subr.mxu0 0.0
    %657 = vmatpush1.msra.mxu0 %v630
    %658 = vmatprep.subr.mxu0 0.0
    %659 = vmatpush1.msra.mxu0 %v631
    %660 = vmatprep.subr.mxu0 0.0
    %661 = vmatpush1.msra.mxu0 %v632
    %662 = vmatprep.subr.mxu0 0.0
    %663 = vmatpush1.msra.mxu0 %v633
    %664 = vmatprep.subr.mxu0 0.0
    %665 = vmatpush1.msra.mxu0 %v634
    %666 = vmatprep.subr.mxu0 0.0
    %667 = vmatpush1.msra.mxu0 %v635
    %668 = vmatprep.subr.mxu0 0.0
    %669 = vmatpush1.msra.mxu0 0.0
    %670 = vmatprep.subr.mxu0 0.0
    %671 = vmatpush1.msra.mxu0 0.0
    %672 = vmatprep.subr.mxu0 0.0
    %673 = vmatpush1.msra.mxu0 0.0
    %674 = vmatprep.subr.mxu0 0.0
    %675 = vmatpush1.msra.mxu0 0.0
    %676 = vmatprep.subr.mxu0 0.0
    %677 = vmatpush1.msra.mxu0 0.0
    %678 = vmatprep.subr.mxu0 0.0
    %679 = vmatpush1.msra.mxu0 0.0
    %680 = vmatprep.subr.mxu0 0.0
    %681 = vmatpush1.msra.mxu0 0.0
    %682 = vmatprep.subr.mxu0 0.0
    %683 = vmatpush1.msra.mxu0 0.0
    %684 = vmatprep.subr.mxu0 0.0
    %685 = vmatpush1.msra.mxu0 0.0
    %686 = vmatprep.subr.mxu0 0.0
    %687 = vmatpush1.msra.mxu0 0.0
    %688 = vmatprep.subr.mxu0 0.0
    %689 = vmatpush1.msra.mxu0 0.0
    %690 = vmatprep.subr.mxu0 0.0
    %691 = vmatpush1.msra.mxu0 0.0
    %692 = vmatprep.subr.mxu0 0.0
    %693 = vmatpush1.msra.mxu0 0.0
    %694 = vmatprep.subr.mxu0 0.0
    %695 = vmatpush1.msra.mxu0 0.0
    %696 = vmatprep.subr.mxu0 0.0
    %697 = vmatpush1.msra.mxu0 0.0
    %698 = vmatprep.subr.mxu0 0.0
    %699 = vmatpush1.msra.mxu0 0.0
    %700 = vmatprep.mubr.f32.mxu0 0.0
    %701 = vmatmul.mubr.f32.gmra.mrb[0].mxu0 %v512
    %v702 = vpop.f32.mrb[0].mxu0
    %v703 = vadd.f32 0.0, %v702
    %v704 = vpop.f32.mrb[0].mxu0
    %705 = vdwg.mxu0
    %v706 = vmul.f32 %v703, 0.0
    %vm707 = vcmask 1040384
    %v708 = vsel %vm707, %v706, 0.0
    %709 = vadd.xlane.f32.xlu0 %v708
    %v710 = vpop.xlane.xlu0 %709
    %v711 = vsub.f32 0.0, %v710
    %v712 = vadd.f32 %v619, %v711
    %v713 = vxor.u32 %v712, 2147483648
    %v714 = vmul.f32 %v713, 1.442695
    %v715 = vpow.pop %v714
    %v716 = vadd.f32 %v715, 1.0
    %v717 = vrcp.pop %v716
    %v718 = vmul.f32 1.0, %v717
    %720 = vset.pattern.permute.xlu0 0
    %721 = vperm.xlu0 %720, %v718
    %v722 = vpop.permute.xlu0 %721
    %v724 = vmul.f32 %v512, %v722
    %v725 = vadd.f32 %v724, 0.0
    %vm726 = vcmask 0
    %727 = vst.msk [vmem:[%s11] sm:$0x1] %vm726, %v718
    %v728 = vtanh.pop %v725
    %v730 = vrot.slane %v728, 7
    %v732 = vmul.f32 %v703, %v730
    %vm733 = vcmask 1041409
    %v734 = vsel %vm733, %v732, 0.0
    %735 = vadd.xlane.f32.xlu0 %v734
    %v736 = vpop.xlane.xlu0 %735
    %v737 = vsub.f32 0.0, %v736
    %v738 = vadd.f32 %v619, %v737
    %v739 = vxor.u32 %v738, 2147483648
    %v740 = vmul.f32 %v739, 1.442695
    %v741 = vpow.pop %v740
    %v742 = vadd.f32 %v741, 1.0
    %v743 = vrcp.pop %v742
    %v744 = vmul.f32 1.0, %v743
    %746 = vset.pattern.permute.xlu0 0
    %747 = vperm.xlu0 %746, %v744
    %v748 = vpop.permute.xlu0 %747
    %v750 = vmul.f32 %v512, %v748
    %v752 = vrot.slane %v750, 1
    %v754 = vadd.f32 %v725, %v752
    %vm755 = vcmask 1025
    %756 = vst.msk [vmem:[%s11] sm:$0x2] %vm755, %v744
    %v757 = vtanh.pop %v754
    %v759 = vrot.slane %v757, 6
    %v761 = vmul.f32 %v703, %v759
    %vm762 = vcmask 1042434
    %v763 = vsel %vm762, %v761, 0.0
    %764 = vadd.xlane.f32.xlu0 %v763
    %v765 = vpop.xlane.xlu0 %764
    %v766 = vsub.f32 0.0, %v765
    %v767 = vadd.f32 %v619, %v766
    %v768 = vxor.u32 %v767, 2147483648
    %v769 = vmul.f32 %v768, 1.442695
    %v770 = vpow.pop %v769
    %v771 = vadd.f32 %v770, 1.0
    %v772 = vrcp.pop %v771
    %v773 = vmul.f32 1.0, %v772
    %775 = vset.pattern.permute.xlu0 0
    %776 = vperm.xlu0 %775, %v773
    %v777 = vpop.permute.xlu0 %776
    %v779 = vmul.f32 %v512, %v777
    %v781 = vrot.slane %v779, 2
    %v783 = vadd.f32 %v754, %v781
    %vm784 = vcmask 2050
    %785 = vst.msk [vmem:[%s11] sm:$0x4] %vm784, %v773
    %v786 = vtanh.pop %v783
    %v788 = vrot.slane %v786, 5
    %v790 = vmul.f32 %v703, %v788
    %vm791 = vcmask 1043459
    %v792 = vsel %vm791, %v790, 0.0
    %793 = vadd.xlane.f32.xlu0 %v792
    %v794 = vpop.xlane.xlu0 %793
    %v795 = vsub.f32 0.0, %v794
    %v796 = vadd.f32 %v619, %v795
    %v797 = vxor.u32 %v796, 2147483648
    %v798 = vmul.f32 %v797, 1.442695
    %v799 = vpow.pop %v798
    %v800 = vadd.f32 %v799, 1.0
    %v801 = vrcp.pop %v800
    %v802 = vmul.f32 1.0, %v801
    %804 = vset.pattern.permute.xlu0 0
    %805 = vperm.xlu0 %804, %v802
    %v806 = vpop.permute.xlu0 %805
    %v808 = vmul.f32 %v512, %v806
    %v810 = vrot.slane %v808, 3
    %v812 = vadd.f32 %v783, %v810
    %vm813 = vcmask 3075
    %814 = vst.msk [vmem:[%s11] sm:$0x8] %vm813, %v802
    %v815 = vtanh.pop %v812
    %v817 = vrot.slane %v815, 4
    %v819 = vmul.f32 %v703, %v817
    %vm820 = vcmask 1044484
    %v821 = vsel %vm820, %v819, 0.0
    %822 = vadd.xlane.f32.xlu0 %v821
    %v823 = vpop.xlane.xlu0 %822
    %v824 = vsub.f32 0.0, %v823
    %v825 = vadd.f32 %v619, %v824
    %v826 = vxor.u32 %v825, 2147483648
    %v827 = vmul.f32 %v826, 1.442695
    %v828 = vpow.pop %v827
    %v829 = vadd.f32 %v828, 1.0
    %v830 = vrcp.pop %v829
    %v831 = vmul.f32 1.0, %v830
    %833 = vset.pattern.permute.xlu0 0
    %834 = vperm.xlu0 %833, %v831
    %v835 = vpop.permute.xlu0 %834
    %v837 = vmul.f32 %v512, %v835
    %v839 = vrot.slane %v837, 4
    %v841 = vadd.f32 %v812, %v839
    %vm842 = vcmask 4100
    %843 = vst.msk [vmem:[%s11] sm:$0x10] %vm842, %v831
    %v844 = vtanh.pop %v841
    %v846 = vrot.slane %v844, 3
    %v848 = vmul.f32 %v703, %v846
    %vm849 = vcmask 1045509
    %v850 = vsel %vm849, %v848, 0.0
    %851 = vadd.xlane.f32.xlu0 %v850
    %v852 = vpop.xlane.xlu0 %851
    %v853 = vsub.f32 0.0, %v852
    %v854 = vadd.f32 %v619, %v853
    %v855 = vxor.u32 %v854, 2147483648
    %v856 = vmul.f32 %v855, 1.442695
    %v857 = vpow.pop %v856
    %v858 = vadd.f32 %v857, 1.0
    %v859 = vrcp.pop %v858
    %v860 = vmul.f32 1.0, %v859
    %862 = vset.pattern.permute.xlu0 0
    %863 = vperm.xlu0 %862, %v860
    %v864 = vpop.permute.xlu0 %863
    %v866 = vmul.f32 %v512, %v864
    %v868 = vrot.slane %v866, 5
    %v870 = vadd.f32 %v841, %v868
    %vm871 = vcmask 5125
    %872 = vst.msk [vmem:[%s11] sm:$0x20] %vm871, %v860
    %v873 = vtanh.pop %v870
    %v875 = vrot.slane %v873, 2
    %v877 = vmul.f32 %v703, %v875
    %vm878 = vcmask 1046534
    %v879 = vsel %vm878, %v877, 0.0
    %880 = vadd.xlane.f32.xlu0 %v879
    %v881 = vpop.xlane.xlu0 %880
    %v882 = vsub.f32 0.0, %v881
    %v883 = vadd.f32 %v619, %v882
    %v884 = vxor.u32 %v883, 2147483648
    %v885 = vmul.f32 %v884, 1.442695
    %v886 = vpow.pop %v885
    %v887 = vadd.f32 %v886, 1.0
    %v888 = vrcp.pop %v887
    %v889 = vmul.f32 1.0, %v888
    %891 = vset.pattern.permute.xlu0 0
    %892 = vperm.xlu0 %891, %v889
    %v893 = vpop.permute.xlu0 %892
    %v895 = vmul.f32 %v512, %v893
    %v897 = vrot.slane %v895, 6
    %v899 = vadd.f32 %v870, %v897
    %vm900 = vcmask 6150
    %901 = vst.msk [vmem:[%s11] sm:$0x40] %vm900, %v889
    %v902 = vtanh.pop %v899
    %v904 = vrot.slane %v902, 1
    %v906 = vmul.f32 %v703, %v904
    %vm907 = vcmask 1047559
    %v908 = vsel %vm907, %v906, 0.0
    %909 = vadd.xlane.f32.xlu0 %v908
    %v910 = vpop.xlane.xlu0 %909
    %v911 = vsub.f32 0.0, %v910
    %v912 = vadd.f32 %v619, %v911
    %v913 = vxor.u32 %v912, 2147483648
    %v914 = vmul.f32 %v913, 1.442695
    %v915 = vpow.pop %v914
    %v916 = vadd.f32 %v915, 1.0
    %v917 = vrcp.pop %v916
    %v918 = vmul.f32 1.0, %v917
    %vm919 = vcmask 7175
    %920 = vst.msk [vmem:[%s11] sm:$0x80] %vm919, %v918
    // Predicated region
    $region66: #{simple_runner_forward.1} parent=1 // pred_check
      _
    $region67: #{simple_runner_forward.1} parent=1 // pred_check_branch
      %922 = sbr.rel (0) target = $region69
    $region68: #{simple_runner_forward.1} parent=1 // pred_region
      _
    $region69: #{simple_runner_forward.1} parent=1 // pred_fallthru
      _
    // Predicated region
    $region70: #{simple_runner_forward.1} parent=1 // pred_check
      _
    $region71: #{simple_runner_forward.1} parent=1 // pred_check_branch
      %924 = sbr.rel (0) target = $region73
    $region72: #{simple_runner_forward.1} parent=1 // pred_region
      _
    $region73: #{simple_runner_forward.1} parent=1 // pred_fallthru
      _
    %925 = vsyncpa [#allocation4], 1
    %926 = vsyncpa [#allocation6], 1
    %927 = vsyncpa [#allocation9], 1

</llo_original>
